<compile_context>
chip_gen: v7x
topology: tpu7x:2x2x1
jax: 0.10.0
libtpu: 0.0.40
codegen_flags: <defaults>
</compile_context>

<pallas_src>
import functools

import jax
import jax.numpy as jnp
from jax.experimental import pallas as pl
from jax.experimental.pallas import tpu as pltpu

LANE = 128      # TPU lane tile (last dim)
SUBLANE = 8     # TPU sublane tile (second-to-last dim, f32)


def _round_up(n, m):
    return ((n + m - 1) // m) * m


def _pad_to(x, rows=None, cols=None):
    """Zero-pad a 2-D array up to (rows, cols)."""
    r, c = x.shape
    rows = r if rows is None else rows
    cols = c if cols is None else cols
    return jnp.zeros((rows, cols), x.dtype).at[:r, :c].set(x)


# ----------------------------- fused Pallas kernel -------------------------- #

def _imgques_kernel(tok_ref, qlen_ref, patches_ref, wconv_ref, bconv_ref,
                    embw_ref, blstm_ref, whh_ref,
                    w1c_ref, w1l_ref, b1_ref, w2_ref, b2_ref,
                    out_ref, xproj_ref):
    f32, bf16 = jnp.float32, jnp.bfloat16
    b_pad = qlen_ref.shape[0]
    seq_len = tok_ref.shape[0] // b_pad
    vocab_pad = embw_ref.shape[0]
    hdim = whh_ref.shape[0]                       # per-gate width H (4*H = 128)
    n_patches, cout, mlp_pad = w1c_ref.shape

    # ---- question branch: one-hot token gather fused into the LSTM input ---- #
    # projection -> a single MXU matmul (review item 1); result parked in a
    # VMEM scratch so the unrolled recurrence keeps only one slice live (item 8).
    tok = tok_ref[...]                                            # (T*b_pad, 1)
    lane = jax.lax.broadcasted_iota(jnp.int32, (seq_len * b_pad, vocab_pad), 1)
    onehot = (lane == tok).astype(bf16)                           # exact in bf16
    xproj_ref[...] = (
        jnp.dot(onehot, embw_ref[...], preferred_element_type=f32)
        + blstm_ref[...])                                         # (T*b_pad, 4H) f32

    # ---- image branch: strided-conv stand-in + ReLU, then the conv part of -- #
    # the MLP first layer as P accumulating per-patch matmuls (item 4; no P^2
    # block-diagonal weight).  Patch rows are ordered (p * b_pad + b) so each
    # per-patch block is a sublane-aligned slice and the conv matmul feeds
    # M = P*b_pad rows into the MXU.
    conv = jnp.maximum(
        jnp.dot(patches_ref[...], wconv_ref[...], preferred_element_type=f32)
        + bconv_ref[...], 0.0)                                    # (P*b_pad, cout) f32
    h1_acc = jnp.zeros((b_pad, mlp_pad), f32)
    for p in range(n_patches):                                    # independent of LSTM
        cblk = conv[p * b_pad:(p + 1) * b_pad, :].astype(bf16)    # (b_pad, cout)
        h1_acc = h1_acc + jnp.dot(cblk, w1c_ref[p],
                                  preferred_element_type=f32)     # (b_pad, mlp_pad)

    # ---- LSTM recurrence: tight 128-lane gate packing (item 2), bf16 matmul - #
    # operands with f32 state/accumulation (item 3).
    h = jnp.zeros((b_pad, hdim), f32)
    c = jnp.zeros((b_pad, hdim), f32)
    last = jnp.zeros((b_pad, hdim), f32)
    qlen = qlen_ref[...]                                          # (b_pad, 1) int32
    for t in range(seq_len):                                      # static unroll, T=8
        xs = xproj_ref[t * b_pad:(t + 1) * b_pad, :]              # (b_pad, 4H) f32
        gates = xs + jnp.dot(h.astype(bf16), whh_ref[...],
                             preferred_element_type=f32)          # (b_pad, 4H) f32
        sig = jax.nn.sigmoid(gates)                               # one EUP pass
        tnh = jnp.tanh(gates)                                     # one EUP pass
        # PyTorch gate order i, f, g, o; static 32-lane slices lower to XLU
        # lane rotates (same unit/cost as pltpu.roll-based alignment).
        i_g = sig[:, 0 * hdim:1 * hdim]
        f_g = sig[:, 1 * hdim:2 * hdim]
        g_g = tnh[:, 2 * hdim:3 * hdim]
        o_g = sig[:, 3 * hdim:4 * hdim]
        c = f_g * c + i_g * g_g
        h = o_g * jnp.tanh(c)
        # pad_packed + gather(last step)  ==  select h at t == qlen - 1
        last = jnp.where(qlen == (t + 1), h, last)

    # ---- fusion + MLP (concat folded into a split first layer) -------------- #
    h1 = jnp.maximum(
        h1_acc
        + jnp.dot(last.astype(bf16), w1l_ref[...], preferred_element_type=f32)
        + b1_ref[...], 0.0)
    out_ref[...] = (jnp.dot(h1.astype(bf16), w2_ref[...],
                            preferred_element_type=f32) + b2_ref[...])


# ------------------------------ host-side plumbing -------------------------- #

def extract_patches(img_nchw, k):
    """im2col for stride == kernel (non-overlapping patches): (B, P, C*k*k)."""
    B, C, H, W = img_nchw.shape
    OH, OW = H // k, W // k
    p = img_nchw.reshape(B, C, OH, k, OW, k)
    p = p.transpose(0, 2, 4, 1, 3, 5)                 # (B, OH, OW, C, k, k)
    return p.reshape(B, OH * OW, C * k * k)


def prepare_params(params):
    """One-time host-side repack into the fused-kernel layout (bf16 weights)."""
    bf16 = jnp.bfloat16
    P = params["num_patches"]
    w_conv = params["w_conv"].astype(jnp.float32)          # (C*k*k, cout)
    b_conv = params["b_conv"].astype(jnp.float32)          # (1, cout)
    ckk, cout = w_conv.shape
    ckk_pad = _round_up(ckk, LANE)

    embed = params["embed"].astype(jnp.float32)            # (V, E)
    w_ih = params["w_ih"].astype(jnp.float32)              # (E, 4H)
    vocab_pad = _round_up(embed.shape[0], LANE)

    mlp_hidden = params["w1"].shape[1]
    n_class = params["w2"].shape[1]
    mlp_pad = _round_up(mlp_hidden, LANE)
    cls_pad = _round_up(n_class, LANE)

    # Review item 1: fold the embedding through the LSTM input projection so
    # the in-kernel gather is one one-hot matmul.  b_lstm == b_ih + b_hh.
    emb_wih = _pad_to(embed @ w_ih, rows=vocab_pad)        # (vocab_pad, 4H)

    # Review item 4: no kron block-diagonal.  The conv weight stays (ckk, cout);
    # the conv part of the MLP first layer is re-permuted from PyTorch's
    # channel-major view(B,-1) order (row = c*P + p) into per-patch (p, c)
    # blocks laid out (P, cout, mlp_pad) for clean leading-axis ref slicing.
    w1 = params["w1"].astype(jnp.float32)
    w1_conv = w1[:cout * P].reshape(cout, P, mlp_hidden).transpose(1, 0, 2)
    w1_conv = jnp.zeros((P, cout, mlp_pad),
                        jnp.float32).at[:, :, :mlp_hidden].set(w1_conv)

    arrays = dict(
        w_conv=_pad_to(w_conv, rows=ckk_pad).astype(bf16),        # (ckk_pad, cout)
        b_conv=b_conv,                                            # (1, cout) f32
        emb_wih=emb_wih.astype(bf16),                             # (vocab_pad, 4H)
        b_lstm=params["b_lstm"].astype(jnp.float32),              # (1, 4H) f32
        w_hh=params["w_hh"].astype(bf16),                         # (H, 4H), tight gates
        w1_conv=w1_conv.astype(bf16),                             # (P, cout, mlp_pad)
        w1_lstm=_pad_to(w1[cout * P:], cols=mlp_pad).astype(bf16),  # (H, mlp_pad)
        b1=_pad_to(params["b1"].astype(jnp.float32), cols=mlp_pad),
        w2=_pad_to(params["w2"].astype(jnp.float32),
                   rows=mlp_pad, cols=cls_pad).astype(bf16),
        b2=_pad_to(params["b2"].astype(jnp.float32), cols=cls_pad),
    )
    cfg = dict(conv_kernel=params["conv_kernel"], num_patches=P,
               ckk_pad=ckk_pad, n_class=n_class)
    return arrays, cfg


def imgques_forward(kparams, image, question, question_len, cfg):
    B = image.shape[0]
    T = question.shape[1]
    k = cfg["conv_kernel"]
    P = cfg["num_patches"]
    ckk_pad = cfg["ckk_pad"]
    n_class = cfg["n_class"]
    four_h = kparams["w_hh"].shape[1]
    n_out = kparams["w2"].shape[1]

    b_pad = _round_up(max(B, SUBLANE), SUBLANE)
    # TODO(synk): at real batch sizes, tile b_pad over a ("parallel",) grid so
    # both v7x TensorCores are used and patch tiles double-buffer their DMAs.

    # im2col, patch-major rows (p * b_pad + b): lane-padded features, zero rows
    # for the padded batch (their outputs are discarded below).
    patches = extract_patches(image, k)                            # (B, P, ckk)
    ckk = patches.shape[2]
    pat = jnp.zeros((P, b_pad, ckk_pad), jnp.float32)
    pat = pat.at[:, :B, :ckk].set(jnp.transpose(patches, (1, 0, 2)))
    pat = pat.reshape(P * b_pad, ckk_pad).astype(jnp.bfloat16)

    # Time-major token ids (T*b_pad, 1); padded batch rows read token 0 but are
    # never selected (their qlen is 0) and their output rows are sliced away.
    tok = jnp.zeros((T, b_pad), jnp.int32).at[:, :B].set(
        jnp.transpose(question).astype(jnp.int32)).reshape(T * b_pad, 1)
    qlen = jnp.zeros((b_pad, 1), jnp.int32).at[:B, 0].set(
        question_len.astype(jnp.int32))

    logits_pad = pl.pallas_call(
        _imgques_kernel,
        out_shape=jax.ShapeDtypeStruct((b_pad, n_out), jnp.float32),
        in_specs=[pl.BlockSpec(memory_space=pltpu.MemorySpace.VMEM)
                  for _ in range(13)],
        out_specs=pl.BlockSpec(memory_space=pltpu.MemorySpace.VMEM),
        scratch_shapes=[pltpu.VMEM((T * b_pad, four_h), jnp.float32)],
    )(tok, qlen, pat,
      kparams["w_conv"], kparams["b_conv"],
      kparams["emb_wih"], kparams["b_lstm"], kparams["w_hh"],
      kparams["w1_conv"], kparams["w1_lstm"], kparams["b1"],
      kparams["w2"], kparams["b2"])

    return logits_pad[:B, :n_class]


# ----------------------------------- main ----------------------------------- #

if __name__ == "__main__":
    # Small, forward-consistent config.
    n_class = 10
    n_vocab = 32
    embed_hidden = 32
    lstm_hidden = 32
    enc_image_size = 4
    conv_output_size = 8
    mlp_hidden_size = 32
    B, T = 2, 8
    C_in, H_img, W_img = 3, 16, 16
    k = H_img // enc_image_size                      # stride/kernel of stand-in conv
    P = enc_image_size * enc_image_size

    key = jax.random.PRNGKey(0)
    keys = jax.random.split(key, 14)
    s = 0.1

    image = jax.random.normal(keys[0], (B, C_in, H_img, W_img), jnp.float32)
    question = jax.random.randint(keys[1], (B, T), 0, n_vocab, jnp.int32)
    question_len = jnp.array([T, 5], dtype=jnp.int32)   # sorted decreasing (pack_padded)

    # pack_padded assumption: 1 <= len <= T (otherwise last_output stays zero).
    assert int(question_len.min()) >= 1 and int(question_len.max()) <= T

    feat_dim = conv_output_size * enc_image_size * enc_image_size + lstm_hidden
    params = {
        "conv_kernel": k,
        "num_patches": P,
        "embed": jax.random.normal(keys[2], (n_vocab, embed_hidden), jnp.float32) * s,
        "w_conv": jax.random.normal(keys[3], (C_in * k * k, conv_output_size), jnp.float32) * s,
        "b_conv": jax.random.normal(keys[4], (1, conv_output_size), jnp.float32) * s,
        "w_ih": jax.random.normal(keys[5], (embed_hidden, 4 * lstm_hidden), jnp.float32) * s,
        "w_hh": jax.random.normal(keys[6], (lstm_hidden, 4 * lstm_hidden), jnp.float32) * s,
        "b_lstm": jax.random.normal(keys[7], (1, 4 * lstm_hidden), jnp.float32) * s,
        "w1": jax.random.normal(keys[8], (feat_dim, mlp_hidden_size), jnp.float32) * s,
        "b1": jax.random.normal(keys[9], (1, mlp_hidden_size), jnp.float32) * s,
        "w2": jax.random.normal(keys[10], (mlp_hidden_size, n_class), jnp.float32) * s,
        "b2": jax.random.normal(keys[11], (1, n_class), jnp.float32) * s,
    }

    kparams, cfg = prepare_params(params)            # one-time host-side repack
    forward = jax.jit(functools.partial(imgques_forward, cfg=cfg))

    logits = forward(kparams, image, question, question_len)
    jax.block_until_ready(logits)
    assert logits.shape == (B, n_class), logits.shape
    assert bool(jnp.isfinite(logits).all())
    print("KERNEL_OK")
</pallas_src>

<mosaic_0001>
module attributes {stable_mosaic.version = 11 : i64} {
  func.func @_imgques_kernel(%arg0: memref<64x1xi32, #tpu.memory_space<vmem>>, %arg1: memref<8x1xi32, #tpu.memory_space<vmem>>, %arg2: memref<128x128xbf16, #tpu.memory_space<vmem>>, %arg3: memref<128x8xbf16, #tpu.memory_space<vmem>>, %arg4: memref<1x8xf32, #tpu.memory_space<vmem>>, %arg5: memref<128x128xbf16, #tpu.memory_space<vmem>>, %arg6: memref<1x128xf32, #tpu.memory_space<vmem>>, %arg7: memref<32x128xbf16, #tpu.memory_space<vmem>>, %arg8: memref<16x8x128xbf16, #tpu.memory_space<vmem>>, %arg9: memref<32x128xbf16, #tpu.memory_space<vmem>>, %arg10: memref<1x128xf32, #tpu.memory_space<vmem>>, %arg11: memref<128x128xbf16, #tpu.memory_space<vmem>>, %arg12: memref<1x128xf32, #tpu.memory_space<vmem>>, %arg13: memref<8x128xf32, #tpu.memory_space<vmem>>, %arg14: memref<64x128xf32, #tpu.memory_space<vmem>>) attributes {dimension_semantics = [], scalar_prefetch = 0 : i64, scratch_operands = 1 : i64, tpu.core_type = #tpu.core_type<tc>} {
    %c0 = arith.constant 0 : index
    %c0_0 = arith.constant 0 : index
    %0 = vector.load %arg0[%c0, %c0_0] : memref<64x1xi32, #tpu.memory_space<vmem>>, vector<64x1xi32>
    %1 = tpu.iota {dimensions = array<i32: 1>} : vector<64x128xi32>
    %2 = vector.broadcast %0 : vector<64x1xi32> to vector<64x128xi32>
    %3 = arith.cmpi eq, %1, %2 : vector<64x128xi32>
    %4 = arith.extui %3 : vector<64x128xi1> to vector<64x128xi32>
    %5 = arith.sitofp %4 : vector<64x128xi32> to vector<64x128xf32>
    %6 = arith.truncf %5 : vector<64x128xf32> to vector<64x128xbf16>
    %c0_1 = arith.constant 0 : index
    %c0_2 = arith.constant 0 : index
    %7 = vector.load %arg5[%c0_1, %c0_2] : memref<128x128xbf16, #tpu.memory_space<vmem>>, vector<128x128xbf16>
    %cst = arith.constant dense<0.000000e+00> : vector<64x128xf32>
    %8 = tpu.matmul %6, %7, %cst {dimension_numbers = #tpu.dot_dimension_numbers<[1], [0], [0], [1], [0, 0, 1, 1], [], []>} : vector<64x128xbf16>, vector<128x128xbf16>, vector<64x128xf32> -> vector<64x128xf32>
    %c0_3 = arith.constant 0 : index
    %c0_4 = arith.constant 0 : index
    %9 = vector.load %arg6[%c0_3, %c0_4] : memref<1x128xf32, #tpu.memory_space<vmem>>, vector<1x128xf32>
    %10 = vector.broadcast %9 : vector<1x128xf32> to vector<64x128xf32>
    %11 = arith.addf %8, %10 : vector<64x128xf32>
    %c0_5 = arith.constant 0 : index
    %c0_6 = arith.constant 0 : index
    %12 = vector.load %arg14[%c0_5, %c0_6] : memref<64x128xf32, #tpu.memory_space<vmem>>, vector<64x128xf32>
    tpu.vector_store %arg14[%c0_5, %c0_6], %11 {strides = array<i32>} : memref<64x128xf32, #tpu.memory_space<vmem>>, vector<64x128xf32>,
    %c0_7 = arith.constant 0 : index
    %c0_8 = arith.constant 0 : index
    %13 = vector.load %arg2[%c0_7, %c0_8] : memref<128x128xbf16, #tpu.memory_space<vmem>>, vector<128x128xbf16>
    %c0_9 = arith.constant 0 : index
    %c0_10 = arith.constant 0 : index
    %14 = vector.load %arg3[%c0_9, %c0_10] : memref<128x8xbf16, #tpu.memory_space<vmem>>, vector<128x8xbf16>
    %cst_11 = arith.constant dense<0.000000e+00> : vector<128x8xf32>
    %15 = tpu.matmul %13, %14, %cst_11 {dimension_numbers = #tpu.dot_dimension_numbers<[1], [0], [0], [1], [0, 0, 1, 1], [], []>} : vector<128x128xbf16>, vector<128x8xbf16>, vector<128x8xf32> -> vector<128x8xf32>
    %c0_12 = arith.constant 0 : index
    %c0_13 = arith.constant 0 : index
    %16 = vector.load %arg4[%c0_12, %c0_13] : memref<1x8xf32, #tpu.memory_space<vmem>>, vector<1x8xf32>
    %17 = vector.broadcast %16 : vector<1x8xf32> to vector<128x8xf32>
    %18 = arith.addf %15, %17 : vector<128x8xf32>
    %cst_14 = arith.constant 0.000000e+00 : f32
    %19 = vector.broadcast %cst_14 : f32 to vector<128x8xf32>
    %20 = arith.maximumf %18, %19 : vector<128x8xf32>
    %cst_15 = arith.constant 0.000000e+00 : f32
    %21 = vector.broadcast %cst_15 : f32 to vector<8x128xf32>
    %22 = vector.extract_strided_slice %20 {offsets = [0, 0], sizes = [8, 8], strides = [1, 1]} : vector<128x8xf32> to vector<8x8xf32>
    %23 = arith.truncf %22 : vector<8x8xf32> to vector<8x8xbf16>
    %c0_16 = arith.constant 0 : index
    %c0_17 = arith.constant 0 : index
    %c0_18 = arith.constant 0 : index
    %24 = vector.load %arg8[%c0_16, %c0_17, %c0_18] : memref<16x8x128xbf16, #tpu.memory_space<vmem>>, vector<1x8x128xbf16>
    %25 = vector.shape_cast %24 : vector<1x8x128xbf16> to vector<8x128xbf16>
    %cst_19 = arith.constant dense<0.000000e+00> : vector<8x128xf32>
    %26 = tpu.matmul %23, %25, %cst_19 {dimension_numbers = #tpu.dot_dimension_numbers<[1], [0], [0], [1], [0, 0, 1, 1], [], []>} : vector<8x8xbf16>, vector<8x128xbf16>, vector<8x128xf32> -> vector<8x128xf32>
    %27 = arith.addf %21, %26 : vector<8x128xf32>
    %28 = vector.extract_strided_slice %20 {offsets = [8, 0], sizes = [8, 8], strides = [1, 1]} : vector<128x8xf32> to vector<8x8xf32>
    %29 = arith.truncf %28 : vector<8x8xf32> to vector<8x8xbf16>
    %c1 = arith.constant 1 : index
    %c0_20 = arith.constant 0 : index
    %c0_21 = arith.constant 0 : index
    %30 = vector.load %arg8[%c1, %c0_20, %c0_21] : memref<16x8x128xbf16, #tpu.memory_space<vmem>>, vector<1x8x128xbf16>
    %31 = vector.shape_cast %30 : vector<1x8x128xbf16> to vector<8x128xbf16>
    %cst_22 = arith.constant dense<0.000000e+00> : vector<8x128xf32>
    %32 = tpu.matmul %29, %31, %cst_22 {dimension_numbers = #tpu.dot_dimension_numbers<[1], [0], [0], [1], [0, 0, 1, 1], [], []>} : vector<8x8xbf16>, vector<8x128xbf16>, vector<8x128xf32> -> vector<8x128xf32>
    %33 = arith.addf %27, %32 : vector<8x128xf32>
    %34 = vector.extract_strided_slice %20 {offsets = [16, 0], sizes = [8, 8], strides = [1, 1]} : vector<128x8xf32> to vector<8x8xf32>
    %35 = arith.truncf %34 : vector<8x8xf32> to vector<8x8xbf16>
    %c2 = arith.constant 2 : index
    %c0_23 = arith.constant 0 : index
    %c0_24 = arith.constant 0 : index
    %36 = vector.load %arg8[%c2, %c0_23, %c0_24] : memref<16x8x128xbf16, #tpu.memory_space<vmem>>, vector<1x8x128xbf16>
    %37 = vector.shape_cast %36 : vector<1x8x128xbf16> to vector<8x128xbf16>
    %cst_25 = arith.constant dense<0.000000e+00> : vector<8x128xf32>
    %38 = tpu.matmul %35, %37, %cst_25 {dimension_numbers = #tpu.dot_dimension_numbers<[1], [0], [0], [1], [0, 0, 1, 1], [], []>} : vector<8x8xbf16>, vector<8x128xbf16>, vector<8x128xf32> -> vector<8x128xf32>
    %39 = arith.addf %33, %38 : vector<8x128xf32>
    %40 = vector.extract_strided_slice %20 {offsets = [24, 0], sizes = [8, 8], strides = [1, 1]} : vector<128x8xf32> to vector<8x8xf32>
    %41 = arith.truncf %40 : vector<8x8xf32> to vector<8x8xbf16>
    %c3 = arith.constant 3 : index
    %c0_26 = arith.constant 0 : index
    %c0_27 = arith.constant 0 : index
    %42 = vector.load %arg8[%c3, %c0_26, %c0_27] : memref<16x8x128xbf16, #tpu.memory_space<vmem>>, vector<1x8x128xbf16>
    %43 = vector.shape_cast %42 : vector<1x8x128xbf16> to vector<8x128xbf16>
    %cst_28 = arith.constant dense<0.000000e+00> : vector<8x128xf32>
    %44 = tpu.matmul %41, %43, %cst_28 {dimension_numbers = #tpu.dot_dimension_numbers<[1], [0], [0], [1], [0, 0, 1, 1], [], []>} : vector<8x8xbf16>, vector<8x128xbf16>, vector<8x128xf32> -> vector<8x128xf32>
    %45 = arith.addf %39, %44 : vector<8x128xf32>
    %46 = vector.extract_strided_slice %20 {offsets = [32, 0], sizes = [8, 8], strides = [1, 1]} : vector<128x8xf32> to vector<8x8xf32>
    %47 = arith.truncf %46 : vector<8x8xf32> to vector<8x8xbf16>
    %c4 = arith.constant 4 : index
    %c0_29 = arith.constant 0 : index
    %c0_30 = arith.constant 0 : index
    %48 = vector.load %arg8[%c4, %c0_29, %c0_30] : memref<16x8x128xbf16, #tpu.memory_space<vmem>>, vector<1x8x128xbf16>
    %49 = vector.shape_cast %48 : vector<1x8x128xbf16> to vector<8x128xbf16>
    %cst_31 = arith.constant dense<0.000000e+00> : vector<8x128xf32>
    %50 = tpu.matmul %47, %49, %cst_31 {dimension_numbers = #tpu.dot_dimension_numbers<[1], [0], [0], [1], [0, 0, 1, 1], [], []>} : vector<8x8xbf16>, vector<8x128xbf16>, vector<8x128xf32> -> vector<8x128xf32>
    %51 = arith.addf %45, %50 : vector<8x128xf32>
    %52 = vector.extract_strided_slice %20 {offsets = [40, 0], sizes = [8, 8], strides = [1, 1]} : vector<128x8xf32> to vector<8x8xf32>
    %53 = arith.truncf %52 : vector<8x8xf32> to vector<8x8xbf16>
    %c5 = arith.constant 5 : index
    %c0_32 = arith.constant 0 : index
    %c0_33 = arith.constant 0 : index
    %54 = vector.load %arg8[%c5, %c0_32, %c0_33] : memref<16x8x128xbf16, #tpu.memory_space<vmem>>, vector<1x8x128xbf16>
    %55 = vector.shape_cast %54 : vector<1x8x128xbf16> to vector<8x128xbf16>
    %cst_34 = arith.constant dense<0.000000e+00> : vector<8x128xf32>
    %56 = tpu.matmul %53, %55, %cst_34 {dimension_numbers = #tpu.dot_dimension_numbers<[1], [0], [0], [1], [0, 0, 1, 1], [], []>} : vector<8x8xbf16>, vector<8x128xbf16>, vector<8x128xf32> -> vector<8x128xf32>
    %57 = arith.addf %51, %56 : vector<8x128xf32>
    %58 = vector.extract_strided_slice %20 {offsets = [48, 0], sizes = [8, 8], strides = [1, 1]} : vector<128x8xf32> to vector<8x8xf32>
    %59 = arith.truncf %58 : vector<8x8xf32> to vector<8x8xbf16>
    %c6 = arith.constant 6 : index
    %c0_35 = arith.constant 0 : index
    %c0_36 = arith.constant 0 : index
    %60 = vector.load %arg8[%c6, %c0_35, %c0_36] : memref<16x8x128xbf16, #tpu.memory_space<vmem>>, vector<1x8x128xbf16>
    %61 = vector.shape_cast %60 : vector<1x8x128xbf16> to vector<8x128xbf16>
    %cst_37 = arith.constant dense<0.000000e+00> : vector<8x128xf32>
    %62 = tpu.matmul %59, %61, %cst_37 {dimension_numbers = #tpu.dot_dimension_numbers<[1], [0], [0], [1], [0, 0, 1, 1], [], []>} : vector<8x8xbf16>, vector<8x128xbf16>, vector<8x128xf32> -> vector<8x128xf32>
    %63 = arith.addf %57, %62 : vector<8x128xf32>
    %64 = vector.extract_strided_slice %20 {offsets = [56, 0], sizes = [8, 8], strides = [1, 1]} : vector<128x8xf32> to vector<8x8xf32>
    %65 = arith.truncf %64 : vector<8x8xf32> to vector<8x8xbf16>
    %c7 = arith.constant 7 : index
    %c0_38 = arith.constant 0 : index
    %c0_39 = arith.constant 0 : index
    %66 = vector.load %arg8[%c7, %c0_38, %c0_39] : memref<16x8x128xbf16, #tpu.memory_space<vmem>>, vector<1x8x128xbf16>
    %67 = vector.shape_cast %66 : vector<1x8x128xbf16> to vector<8x128xbf16>
    %cst_40 = arith.constant dense<0.000000e+00> : vector<8x128xf32>
    %68 = tpu.matmul %65, %67, %cst_40 {dimension_numbers = #tpu.dot_dimension_numbers<[1], [0], [0], [1], [0, 0, 1, 1], [], []>} : vector<8x8xbf16>, vector<8x128xbf16>, vector<8x128xf32> -> vector<8x128xf32>
    %69 = arith.addf %63, %68 : vector<8x128xf32>
    %70 = vector.extract_strided_slice %20 {offsets = [64, 0], sizes = [8, 8], strides = [1, 1]} : vector<128x8xf32> to vector<8x8xf32>
    %71 = arith.truncf %70 : vector<8x8xf32> to vector<8x8xbf16>
    %c8 = arith.constant 8 : index
    %c0_41 = arith.constant 0 : index
    %c0_42 = arith.constant 0 : index
    %72 = vector.load %arg8[%c8, %c0_41, %c0_42] : memref<16x8x128xbf16, #tpu.memory_space<vmem>>, vector<1x8x128xbf16>
    %73 = vector.shape_cast %72 : vector<1x8x128xbf16> to vector<8x128xbf16>
    %cst_43 = arith.constant dense<0.000000e+00> : vector<8x128xf32>
    %74 = tpu.matmul %71, %73, %cst_43 {dimension_numbers = #tpu.dot_dimension_numbers<[1], [0], [0], [1], [0, 0, 1, 1], [], []>} : vector<8x8xbf16>, vector<8x128xbf16>, vector<8x128xf32> -> vector<8x128xf32>
    %75 = arith.addf %69, %74 : vector<8x128xf32>
    %76 = vector.extract_strided_slice %20 {offsets = [72, 0], sizes = [8, 8], strides = [1, 1]} : vector<128x8xf32> to vector<8x8xf32>
    %77 = arith.truncf %76 : vector<8x8xf32> to vector<8x8xbf16>
    %c9 = arith.constant 9 : index
    %c0_44 = arith.constant 0 : index
    %c0_45 = arith.constant 0 : index
    %78 = vector.load %arg8[%c9, %c0_44, %c0_45] : memref<16x8x128xbf16, #tpu.memory_space<vmem>>, vector<1x8x128xbf16>
    %79 = vector.shape_cast %78 : vector<1x8x128xbf16> to vector<8x128xbf16>
    %cst_46 = arith.constant dense<0.000000e+00> : vector<8x128xf32>
    %80 = tpu.matmul %77, %79, %cst_46 {dimension_numbers = #tpu.dot_dimension_numbers<[1], [0], [0], [1], [0, 0, 1, 1], [], []>} : vector<8x8xbf16>, vector<8x128xbf16>, vector<8x128xf32> -> vector<8x128xf32>
    %81 = arith.addf %75, %80 : vector<8x128xf32>
    %82 = vector.extract_strided_slice %20 {offsets = [80, 0], sizes = [8, 8], strides = [1, 1]} : vector<128x8xf32> to vector<8x8xf32>
    %83 = arith.truncf %82 : vector<8x8xf32> to vector<8x8xbf16>
    %c10 = arith.constant 10 : index
    %c0_47 = arith.constant 0 : index
    %c0_48 = arith.constant 0 : index
    %84 = vector.load %arg8[%c10, %c0_47, %c0_48] : memref<16x8x128xbf16, #tpu.memory_space<vmem>>, vector<1x8x128xbf16>
    %85 = vector.shape_cast %84 : vector<1x8x128xbf16> to vector<8x128xbf16>
    %cst_49 = arith.constant dense<0.000000e+00> : vector<8x128xf32>
    %86 = tpu.matmul %83, %85, %cst_49 {dimension_numbers = #tpu.dot_dimension_numbers<[1], [0], [0], [1], [0, 0, 1, 1], [], []>} : vector<8x8xbf16>, vector<8x128xbf16>, vector<8x128xf32> -> vector<8x128xf32>
    %87 = arith.addf %81, %86 : vector<8x128xf32>
    %88 = vector.extract_strided_slice %20 {offsets = [88, 0], sizes = [8, 8], strides = [1, 1]} : vector<128x8xf32> to vector<8x8xf32>
    %89 = arith.truncf %88 : vector<8x8xf32> to vector<8x8xbf16>
    %c11 = arith.constant 11 : index
    %c0_50 = arith.constant 0 : index
    %c0_51 = arith.constant 0 : index
    %90 = vector.load %arg8[%c11, %c0_50, %c0_51] : memref<16x8x128xbf16, #tpu.memory_space<vmem>>, vector<1x8x128xbf16>
    %91 = vector.shape_cast %90 : vector<1x8x128xbf16> to vector<8x128xbf16>
    %cst_52 = arith.constant dense<0.000000e+00> : vector<8x128xf32>
    %92 = tpu.matmul %89, %91, %cst_52 {dimension_numbers = #tpu.dot_dimension_numbers<[1], [0], [0], [1], [0, 0, 1, 1], [], []>} : vector<8x8xbf16>, vector<8x128xbf16>, vector<8x128xf32> -> vector<8x128xf32>
    %93 = arith.addf %87, %92 : vector<8x128xf32>
    %94 = vector.extract_strided_slice %20 {offsets = [96, 0], sizes = [8, 8], strides = [1, 1]} : vector<128x8xf32> to vector<8x8xf32>
    %95 = arith.truncf %94 : vector<8x8xf32> to vector<8x8xbf16>
    %c12 = arith.constant 12 : index
    %c0_53 = arith.constant 0 : index
    %c0_54 = arith.constant 0 : index
    %96 = vector.load %arg8[%c12, %c0_53, %c0_54] : memref<16x8x128xbf16, #tpu.memory_space<vmem>>, vector<1x8x128xbf16>
    %97 = vector.shape_cast %96 : vector<1x8x128xbf16> to vector<8x128xbf16>
    %cst_55 = arith.constant dense<0.000000e+00> : vector<8x128xf32>
    %98 = tpu.matmul %95, %97, %cst_55 {dimension_numbers = #tpu.dot_dimension_numbers<[1], [0], [0], [1], [0, 0, 1, 1], [], []>} : vector<8x8xbf16>, vector<8x128xbf16>, vector<8x128xf32> -> vector<8x128xf32>
    %99 = arith.addf %93, %98 : vector<8x128xf32>
    %100 = vector.extract_strided_slice %20 {offsets = [104, 0], sizes = [8, 8], strides = [1, 1]} : vector<128x8xf32> to vector<8x8xf32>
    %101 = arith.truncf %100 : vector<8x8xf32> to vector<8x8xbf16>
    %c13 = arith.constant 13 : index
    %c0_56 = arith.constant 0 : index
    %c0_57 = arith.constant 0 : index
    %102 = vector.load %arg8[%c13, %c0_56, %c0_57] : memref<16x8x128xbf16, #tpu.memory_space<vmem>>, vector<1x8x128xbf16>
    %103 = vector.shape_cast %102 : vector<1x8x128xbf16> to vector<8x128xbf16>
    %cst_58 = arith.constant dense<0.000000e+00> : vector<8x128xf32>
    %104 = tpu.matmul %101, %103, %cst_58 {dimension_numbers = #tpu.dot_dimension_numbers<[1], [0], [0], [1], [0, 0, 1, 1], [], []>} : vector<8x8xbf16>, vector<8x128xbf16>, vector<8x128xf32> -> vector<8x128xf32>
    %105 = arith.addf %99, %104 : vector<8x128xf32>
    %106 = vector.extract_strided_slice %20 {offsets = [112, 0], sizes = [8, 8], strides = [1, 1]} : vector<128x8xf32> to vector<8x8xf32>
    %107 = arith.truncf %106 : vector<8x8xf32> to vector<8x8xbf16>
    %c14 = arith.constant 14 : index
    %c0_59 = arith.constant 0 : index
    %c0_60 = arith.constant 0 : index
    %108 = vector.load %arg8[%c14, %c0_59, %c0_60] : memref<16x8x128xbf16, #tpu.memory_space<vmem>>, vector<1x8x128xbf16>
    %109 = vector.shape_cast %108 : vector<1x8x128xbf16> to vector<8x128xbf16>
    %cst_61 = arith.constant dense<0.000000e+00> : vector<8x128xf32>
    %110 = tpu.matmul %107, %109, %cst_61 {dimension_numbers = #tpu.dot_dimension_numbers<[1], [0], [0], [1], [0, 0, 1, 1], [], []>} : vector<8x8xbf16>, vector<8x128xbf16>, vector<8x128xf32> -> vector<8x128xf32>
    %111 = arith.addf %105, %110 : vector<8x128xf32>
    %112 = vector.extract_strided_slice %20 {offsets = [120, 0], sizes = [8, 8], strides = [1, 1]} : vector<128x8xf32> to vector<8x8xf32>
    %113 = arith.truncf %112 : vector<8x8xf32> to vector<8x8xbf16>
    %c15 = arith.constant 15 : index
    %c0_62 = arith.constant 0 : index
    %c0_63 = arith.constant 0 : index
    %114 = vector.load %arg8[%c15, %c0_62, %c0_63] : memref<16x8x128xbf16, #tpu.memory_space<vmem>>, vector<1x8x128xbf16>
    %115 = vector.shape_cast %114 : vector<1x8x128xbf16> to vector<8x128xbf16>
    %cst_64 = arith.constant dense<0.000000e+00> : vector<8x128xf32>
    %116 = tpu.matmul %113, %115, %cst_64 {dimension_numbers = #tpu.dot_dimension_numbers<[1], [0], [0], [1], [0, 0, 1, 1], [], []>} : vector<8x8xbf16>, vector<8x128xbf16>, vector<8x128xf32> -> vector<8x128xf32>
    %117 = arith.addf %111, %116 : vector<8x128xf32>
    %cst_65 = arith.constant 0.000000e+00 : f32
    %118 = vector.broadcast %cst_65 : f32 to vector<8x32xf32>
    %cst_66 = arith.constant 0.000000e+00 : f32
    %119 = vector.broadcast %cst_66 : f32 to vector<8x32xf32>
    %cst_67 = arith.constant 0.000000e+00 : f32
    %120 = vector.broadcast %cst_67 : f32 to vector<8x32xf32>
    %c0_68 = arith.constant 0 : index
    %c0_69 = arith.constant 0 : index
    %121 = vector.load %arg1[%c0_68, %c0_69] : memref<8x1xi32, #tpu.memory_space<vmem>>, vector<8x1xi32>
    %c0_70 = arith.constant 0 : index
    %c0_71 = arith.constant 0 : index
    %122 = vector.load %arg14[%c0_70, %c0_71] : memref<64x128xf32, #tpu.memory_space<vmem>>, vector<8x128xf32>
    %123 = arith.truncf %118 : vector<8x32xf32> to vector<8x32xbf16>
    %c0_72 = arith.constant 0 : index
    %c0_73 = arith.constant 0 : index
    %124 = vector.load %arg7[%c0_72, %c0_73] : memref<32x128xbf16, #tpu.memory_space<vmem>>, vector<32x128xbf16>
    %cst_74 = arith.constant dense<0.000000e+00> : vector<8x128xf32>
    %125 = tpu.matmul %123, %124, %cst_74 {dimension_numbers = #tpu.dot_dimension_numbers<[1], [0], [0], [1], [0, 0, 1, 1], [], []>} : vector<8x32xbf16>, vector<32x128xbf16>, vector<8x128xf32> -> vector<8x128xf32>
    %126 = arith.addf %122, %125 : vector<8x128xf32>
    %127 = arith.negf %126 : vector<8x128xf32>
    %128 = math.exp %127 : vector<8x128xf32>
    %cst_75 = arith.constant 1.000000e+00 : f32
    %129 = vector.broadcast %cst_75 : f32 to vector<8x128xf32>
    %130 = arith.addf %129, %128 : vector<8x128xf32>
    %131 = arith.divf %129, %130 : vector<8x128xf32>
    %132 = math.tanh %126 : vector<8x128xf32>
    %133 = vector.extract_strided_slice %131 {offsets = [0, 0], sizes = [8, 32], strides = [1, 1]} : vector<8x128xf32> to vector<8x32xf32>
    %134 = vector.extract_strided_slice %131 {offsets = [0, 32], sizes = [8, 32], strides = [1, 1]} : vector<8x128xf32> to vector<8x32xf32>
    %135 = vector.extract_strided_slice %132 {offsets = [0, 64], sizes = [8, 32], strides = [1, 1]} : vector<8x128xf32> to vector<8x32xf32>
    %136 = vector.extract_strided_slice %131 {offsets = [0, 96], sizes = [8, 32], strides = [1, 1]} : vector<8x128xf32> to vector<8x32xf32>
    %137 = arith.mulf %134, %119 : vector<8x32xf32>
    %138 = arith.mulf %133, %135 : vector<8x32xf32>
    %139 = arith.addf %137, %138 : vector<8x32xf32>
    %140 = math.tanh %139 : vector<8x32xf32>
    %141 = arith.mulf %136, %140 : vector<8x32xf32>
    %c1_i32 = arith.constant 1 : i32
    %142 = vector.broadcast %c1_i32 : i32 to vector<8x1xi32>
    %143 = arith.cmpi eq, %121, %142 : vector<8x1xi32>
    %144 = vector.shape_cast %143 : vector<8x1xi1> to vector<8x1xi1>
    %145 = vector.broadcast %144 : vector<8x1xi1> to vector<8x32xi1>
    %146 = arith.select %145, %141, %120 : vector<8x32xi1>, vector<8x32xf32>
    %c8_76 = arith.constant 8 : index
    %c0_77 = arith.constant 0 : index
    %147 = vector.load %arg14[%c8_76, %c0_77] : memref<64x128xf32, #tpu.memory_space<vmem>>, vector<8x128xf32>
    %148 = arith.truncf %141 : vector<8x32xf32> to vector<8x32xbf16>
    %c0_78 = arith.constant 0 : index
    %c0_79 = arith.constant 0 : index
    %149 = vector.load %arg7[%c0_78, %c0_79] : memref<32x128xbf16, #tpu.memory_space<vmem>>, vector<32x128xbf16>
    %cst_80 = arith.constant dense<0.000000e+00> : vector<8x128xf32>
    %150 = tpu.matmul %148, %149, %cst_80 {dimension_numbers = #tpu.dot_dimension_numbers<[1], [0], [0], [1], [0, 0, 1, 1], [], []>} : vector<8x32xbf16>, vector<32x128xbf16>, vector<8x128xf32> -> vector<8x128xf32>
    %151 = arith.addf %147, %150 : vector<8x128xf32>
    %152 = arith.negf %151 : vector<8x128xf32>
    %153 = math.exp %152 : vector<8x128xf32>
    %cst_81 = arith.constant 1.000000e+00 : f32
    %154 = vector.broadcast %cst_81 : f32 to vector<8x128xf32>
    %155 = arith.addf %154, %153 : vector<8x128xf32>
    %156 = arith.divf %154, %155 : vector<8x128xf32>
    %157 = math.tanh %151 : vector<8x128xf32>
    %158 = vector.extract_strided_slice %156 {offsets = [0, 0], sizes = [8, 32], strides = [1, 1]} : vector<8x128xf32> to vector<8x32xf32>
    %159 = vector.extract_strided_slice %156 {offsets = [0, 32], sizes = [8, 32], strides = [1, 1]} : vector<8x128xf32> to vector<8x32xf32>
    %160 = vector.extract_strided_slice %157 {offsets = [0, 64], sizes = [8, 32], strides = [1, 1]} : vector<8x128xf32> to vector<8x32xf32>
    %161 = vector.extract_strided_slice %156 {offsets = [0, 96], sizes = [8, 32], strides = [1, 1]} : vector<8x128xf32> to vector<8x32xf32>
    %162 = arith.mulf %159, %139 : vector<8x32xf32>
    %163 = arith.mulf %158, %160 : vector<8x32xf32>
    %164 = arith.addf %162, %163 : vector<8x32xf32>
    %165 = math.tanh %164 : vector<8x32xf32>
    %166 = arith.mulf %161, %165 : vector<8x32xf32>
    %c2_i32 = arith.constant 2 : i32
    %167 = vector.broadcast %c2_i32 : i32 to vector<8x1xi32>
    %168 = arith.cmpi eq, %121, %167 : vector<8x1xi32>
    %169 = vector.shape_cast %168 : vector<8x1xi1> to vector<8x1xi1>
    %170 = vector.broadcast %169 : vector<8x1xi1> to vector<8x32xi1>
    %171 = arith.select %170, %166, %146 : vector<8x32xi1>, vector<8x32xf32>
    %c16 = arith.constant 16 : index
    %c0_82 = arith.constant 0 : index
    %172 = vector.load %arg14[%c16, %c0_82] : memref<64x128xf32, #tpu.memory_space<vmem>>, vector<8x128xf32>
    %173 = arith.truncf %166 : vector<8x32xf32> to vector<8x32xbf16>
    %c0_83 = arith.constant 0 : index
    %c0_84 = arith.constant 0 : index
    %174 = vector.load %arg7[%c0_83, %c0_84] : memref<32x128xbf16, #tpu.memory_space<vmem>>, vector<32x128xbf16>
    %cst_85 = arith.constant dense<0.000000e+00> : vector<8x128xf32>
    %175 = tpu.matmul %173, %174, %cst_85 {dimension_numbers = #tpu.dot_dimension_numbers<[1], [0], [0], [1], [0, 0, 1, 1], [], []>} : vector<8x32xbf16>, vector<32x128xbf16>, vector<8x128xf32> -> vector<8x128xf32>
    %176 = arith.addf %172, %175 : vector<8x128xf32>
    %177 = arith.negf %176 : vector<8x128xf32>
    %178 = math.exp %177 : vector<8x128xf32>
    %cst_86 = arith.constant 1.000000e+00 : f32
    %179 = vector.broadcast %cst_86 : f32 to vector<8x128xf32>
    %180 = arith.addf %179, %178 : vector<8x128xf32>
    %181 = arith.divf %179, %180 : vector<8x128xf32>
    %182 = math.tanh %176 : vector<8x128xf32>
    %183 = vector.extract_strided_slice %181 {offsets = [0, 0], sizes = [8, 32], strides = [1, 1]} : vector<8x128xf32> to vector<8x32xf32>
    %184 = vector.extract_strided_slice %181 {offsets = [0, 32], sizes = [8, 32], strides = [1, 1]} : vector<8x128xf32> to vector<8x32xf32>
    %185 = vector.extract_strided_slice %182 {offsets = [0, 64], sizes = [8, 32], strides = [1, 1]} : vector<8x128xf32> to vector<8x32xf32>
    %186 = vector.extract_strided_slice %181 {offsets = [0, 96], sizes = [8, 32], strides = [1, 1]} : vector<8x128xf32> to vector<8x32xf32>
    %187 = arith.mulf %184, %164 : vector<8x32xf32>
    %188 = arith.mulf %183, %185 : vector<8x32xf32>
    %189 = arith.addf %187, %188 : vector<8x32xf32>
    %190 = math.tanh %189 : vector<8x32xf32>
    %191 = arith.mulf %186, %190 : vector<8x32xf32>
    %c3_i32 = arith.constant 3 : i32
    %192 = vector.broadcast %c3_i32 : i32 to vector<8x1xi32>
    %193 = arith.cmpi eq, %121, %192 : vector<8x1xi32>
    %194 = vector.shape_cast %193 : vector<8x1xi1> to vector<8x1xi1>
    %195 = vector.broadcast %194 : vector<8x1xi1> to vector<8x32xi1>
    %196 = arith.select %195, %191, %171 : vector<8x32xi1>, vector<8x32xf32>
    %c24 = arith.constant 24 : index
    %c0_87 = arith.constant 0 : index
    %197 = vector.load %arg14[%c24, %c0_87] : memref<64x128xf32, #tpu.memory_space<vmem>>, vector<8x128xf32>
    %198 = arith.truncf %191 : vector<8x32xf32> to vector<8x32xbf16>
    %c0_88 = arith.constant 0 : index
    %c0_89 = arith.constant 0 : index
    %199 = vector.load %arg7[%c0_88, %c0_89] : memref<32x128xbf16, #tpu.memory_space<vmem>>, vector<32x128xbf16>
    %cst_90 = arith.constant dense<0.000000e+00> : vector<8x128xf32>
    %200 = tpu.matmul %198, %199, %cst_90 {dimension_numbers = #tpu.dot_dimension_numbers<[1], [0], [0], [1], [0, 0, 1, 1], [], []>} : vector<8x32xbf16>, vector<32x128xbf16>, vector<8x128xf32> -> vector<8x128xf32>
    %201 = arith.addf %197, %200 : vector<8x128xf32>
    %202 = arith.negf %201 : vector<8x128xf32>
    %203 = math.exp %202 : vector<8x128xf32>
    %cst_91 = arith.constant 1.000000e+00 : f32
    %204 = vector.broadcast %cst_91 : f32 to vector<8x128xf32>
    %205 = arith.addf %204, %203 : vector<8x128xf32>
    %206 = arith.divf %204, %205 : vector<8x128xf32>
    %207 = math.tanh %201 : vector<8x128xf32>
    %208 = vector.extract_strided_slice %206 {offsets = [0, 0], sizes = [8, 32], strides = [1, 1]} : vector<8x128xf32> to vector<8x32xf32>
    %209 = vector.extract_strided_slice %206 {offsets = [0, 32], sizes = [8, 32], strides = [1, 1]} : vector<8x128xf32> to vector<8x32xf32>
    %210 = vector.extract_strided_slice %207 {offsets = [0, 64], sizes = [8, 32], strides = [1, 1]} : vector<8x128xf32> to vector<8x32xf32>
    %211 = vector.extract_strided_slice %206 {offsets = [0, 96], sizes = [8, 32], strides = [1, 1]} : vector<8x128xf32> to vector<8x32xf32>
    %212 = arith.mulf %209, %189 : vector<8x32xf32>
    %213 = arith.mulf %208, %210 : vector<8x32xf32>
    %214 = arith.addf %212, %213 : vector<8x32xf32>
    %215 = math.tanh %214 : vector<8x32xf32>
    %216 = arith.mulf %211, %215 : vector<8x32xf32>
    %c4_i32 = arith.constant 4 : i32
    %217 = vector.broadcast %c4_i32 : i32 to vector<8x1xi32>
    %218 = arith.cmpi eq, %121, %217 : vector<8x1xi32>
    %219 = vector.shape_cast %218 : vector<8x1xi1> to vector<8x1xi1>
    %220 = vector.broadcast %219 : vector<8x1xi1> to vector<8x32xi1>
    %221 = arith.select %220, %216, %196 : vector<8x32xi1>, vector<8x32xf32>
    %c32 = arith.constant 32 : index
    %c0_92 = arith.constant 0 : index
    %222 = vector.load %arg14[%c32, %c0_92] : memref<64x128xf32, #tpu.memory_space<vmem>>, vector<8x128xf32>
    %223 = arith.truncf %216 : vector<8x32xf32> to vector<8x32xbf16>
    %c0_93 = arith.constant 0 : index
    %c0_94 = arith.constant 0 : index
    %224 = vector.load %arg7[%c0_93, %c0_94] : memref<32x128xbf16, #tpu.memory_space<vmem>>, vector<32x128xbf16>
    %cst_95 = arith.constant dense<0.000000e+00> : vector<8x128xf32>
    %225 = tpu.matmul %223, %224, %cst_95 {dimension_numbers = #tpu.dot_dimension_numbers<[1], [0], [0], [1], [0, 0, 1, 1], [], []>} : vector<8x32xbf16>, vector<32x128xbf16>, vector<8x128xf32> -> vector<8x128xf32>
    %226 = arith.addf %222, %225 : vector<8x128xf32>
    %227 = arith.negf %226 : vector<8x128xf32>
    %228 = math.exp %227 : vector<8x128xf32>
    %cst_96 = arith.constant 1.000000e+00 : f32
    %229 = vector.broadcast %cst_96 : f32 to vector<8x128xf32>
    %230 = arith.addf %229, %228 : vector<8x128xf32>
    %231 = arith.divf %229, %230 : vector<8x128xf32>
    %232 = math.tanh %226 : vector<8x128xf32>
    %233 = vector.extract_strided_slice %231 {offsets = [0, 0], sizes = [8, 32], strides = [1, 1]} : vector<8x128xf32> to vector<8x32xf32>
    %234 = vector.extract_strided_slice %231 {offsets = [0, 32], sizes = [8, 32], strides = [1, 1]} : vector<8x128xf32> to vector<8x32xf32>
    %235 = vector.extract_strided_slice %232 {offsets = [0, 64], sizes = [8, 32], strides = [1, 1]} : vector<8x128xf32> to vector<8x32xf32>
    %236 = vector.extract_strided_slice %231 {offsets = [0, 96], sizes = [8, 32], strides = [1, 1]} : vector<8x128xf32> to vector<8x32xf32>
    %237 = arith.mulf %234, %214 : vector<8x32xf32>
    %238 = arith.mulf %233, %235 : vector<8x32xf32>
    %239 = arith.addf %237, %238 : vector<8x32xf32>
    %240 = math.tanh %239 : vector<8x32xf32>
    %241 = arith.mulf %236, %240 : vector<8x32xf32>
    %c5_i32 = arith.constant 5 : i32
    %242 = vector.broadcast %c5_i32 : i32 to vector<8x1xi32>
    %243 = arith.cmpi eq, %121, %242 : vector<8x1xi32>
    %244 = vector.shape_cast %243 : vector<8x1xi1> to vector<8x1xi1>
    %245 = vector.broadcast %244 : vector<8x1xi1> to vector<8x32xi1>
    %246 = arith.select %245, %241, %221 : vector<8x32xi1>, vector<8x32xf32>
    %c40 = arith.constant 40 : index
    %c0_97 = arith.constant 0 : index
    %247 = vector.load %arg14[%c40, %c0_97] : memref<64x128xf32, #tpu.memory_space<vmem>>, vector<8x128xf32>
    %248 = arith.truncf %241 : vector<8x32xf32> to vector<8x32xbf16>
    %c0_98 = arith.constant 0 : index
    %c0_99 = arith.constant 0 : index
    %249 = vector.load %arg7[%c0_98, %c0_99] : memref<32x128xbf16, #tpu.memory_space<vmem>>, vector<32x128xbf16>
    %cst_100 = arith.constant dense<0.000000e+00> : vector<8x128xf32>
    %250 = tpu.matmul %248, %249, %cst_100 {dimension_numbers = #tpu.dot_dimension_numbers<[1], [0], [0], [1], [0, 0, 1, 1], [], []>} : vector<8x32xbf16>, vector<32x128xbf16>, vector<8x128xf32> -> vector<8x128xf32>
    %251 = arith.addf %247, %250 : vector<8x128xf32>
    %252 = arith.negf %251 : vector<8x128xf32>
    %253 = math.exp %252 : vector<8x128xf32>
    %cst_101 = arith.constant 1.000000e+00 : f32
    %254 = vector.broadcast %cst_101 : f32 to vector<8x128xf32>
    %255 = arith.addf %254, %253 : vector<8x128xf32>
    %256 = arith.divf %254, %255 : vector<8x128xf32>
    %257 = math.tanh %251 : vector<8x128xf32>
    %258 = vector.extract_strided_slice %256 {offsets = [0, 0], sizes = [8, 32], strides = [1, 1]} : vector<8x128xf32> to vector<8x32xf32>
    %259 = vector.extract_strided_slice %256 {offsets = [0, 32], sizes = [8, 32], strides = [1, 1]} : vector<8x128xf32> to vector<8x32xf32>
    %260 = vector.extract_strided_slice %257 {offsets = [0, 64], sizes = [8, 32], strides = [1, 1]} : vector<8x128xf32> to vector<8x32xf32>
    %261 = vector.extract_strided_slice %256 {offsets = [0, 96], sizes = [8, 32], strides = [1, 1]} : vector<8x128xf32> to vector<8x32xf32>
    %262 = arith.mulf %259, %239 : vector<8x32xf32>
    %263 = arith.mulf %258, %260 : vector<8x32xf32>
    %264 = arith.addf %262, %263 : vector<8x32xf32>
    %265 = math.tanh %264 : vector<8x32xf32>
    %266 = arith.mulf %261, %265 : vector<8x32xf32>
    %c6_i32 = arith.constant 6 : i32
    %267 = vector.broadcast %c6_i32 : i32 to vector<8x1xi32>
    %268 = arith.cmpi eq, %121, %267 : vector<8x1xi32>
    %269 = vector.shape_cast %268 : vector<8x1xi1> to vector<8x1xi1>
    %270 = vector.broadcast %269 : vector<8x1xi1> to vector<8x32xi1>
    %271 = arith.select %270, %266, %246 : vector<8x32xi1>, vector<8x32xf32>
    %c48 = arith.constant 48 : index
    %c0_102 = arith.constant 0 : index
    %272 = vector.load %arg14[%c48, %c0_102] : memref<64x128xf32, #tpu.memory_space<vmem>>, vector<8x128xf32>
    %273 = arith.truncf %266 : vector<8x32xf32> to vector<8x32xbf16>
    %c0_103 = arith.constant 0 : index
    %c0_104 = arith.constant 0 : index
    %274 = vector.load %arg7[%c0_103, %c0_104] : memref<32x128xbf16, #tpu.memory_space<vmem>>, vector<32x128xbf16>
    %cst_105 = arith.constant dense<0.000000e+00> : vector<8x128xf32>
    %275 = tpu.matmul %273, %274, %cst_105 {dimension_numbers = #tpu.dot_dimension_numbers<[1], [0], [0], [1], [0, 0, 1, 1], [], []>} : vector<8x32xbf16>, vector<32x128xbf16>, vector<8x128xf32> -> vector<8x128xf32>
    %276 = arith.addf %272, %275 : vector<8x128xf32>
    %277 = arith.negf %276 : vector<8x128xf32>
    %278 = math.exp %277 : vector<8x128xf32>
    %cst_106 = arith.constant 1.000000e+00 : f32
    %279 = vector.broadcast %cst_106 : f32 to vector<8x128xf32>
    %280 = arith.addf %279, %278 : vector<8x128xf32>
    %281 = arith.divf %279, %280 : vector<8x128xf32>
    %282 = math.tanh %276 : vector<8x128xf32>
    %283 = vector.extract_strided_slice %281 {offsets = [0, 0], sizes = [8, 32], strides = [1, 1]} : vector<8x128xf32> to vector<8x32xf32>
    %284 = vector.extract_strided_slice %281 {offsets = [0, 32], sizes = [8, 32], strides = [1, 1]} : vector<8x128xf32> to vector<8x32xf32>
    %285 = vector.extract_strided_slice %282 {offsets = [0, 64], sizes = [8, 32], strides = [1, 1]} : vector<8x128xf32> to vector<8x32xf32>
    %286 = vector.extract_strided_slice %281 {offsets = [0, 96], sizes = [8, 32], strides = [1, 1]} : vector<8x128xf32> to vector<8x32xf32>
    %287 = arith.mulf %284, %264 : vector<8x32xf32>
    %288 = arith.mulf %283, %285 : vector<8x32xf32>
    %289 = arith.addf %287, %288 : vector<8x32xf32>
    %290 = math.tanh %289 : vector<8x32xf32>
    %291 = arith.mulf %286, %290 : vector<8x32xf32>
    %c7_i32 = arith.constant 7 : i32
    %292 = vector.broadcast %c7_i32 : i32 to vector<8x1xi32>
    %293 = arith.cmpi eq, %121, %292 : vector<8x1xi32>
    %294 = vector.shape_cast %293 : vector<8x1xi1> to vector<8x1xi1>
    %295 = vector.broadcast %294 : vector<8x1xi1> to vector<8x32xi1>
    %296 = arith.select %295, %291, %271 : vector<8x32xi1>, vector<8x32xf32>
    %c56 = arith.constant 56 : index
    %c0_107 = arith.constant 0 : index
    %297 = vector.load %arg14[%c56, %c0_107] : memref<64x128xf32, #tpu.memory_space<vmem>>, vector<8x128xf32>
    %298 = arith.truncf %291 : vector<8x32xf32> to vector<8x32xbf16>
    %c0_108 = arith.constant 0 : index
    %c0_109 = arith.constant 0 : index
    %299 = vector.load %arg7[%c0_108, %c0_109] : memref<32x128xbf16, #tpu.memory_space<vmem>>, vector<32x128xbf16>
    %cst_110 = arith.constant dense<0.000000e+00> : vector<8x128xf32>
    %300 = tpu.matmul %298, %299, %cst_110 {dimension_numbers = #tpu.dot_dimension_numbers<[1], [0], [0], [1], [0, 0, 1, 1], [], []>} : vector<8x32xbf16>, vector<32x128xbf16>, vector<8x128xf32> -> vector<8x128xf32>
    %301 = arith.addf %297, %300 : vector<8x128xf32>
    %302 = arith.negf %301 : vector<8x128xf32>
    %303 = math.exp %302 : vector<8x128xf32>
    %cst_111 = arith.constant 1.000000e+00 : f32
    %304 = vector.broadcast %cst_111 : f32 to vector<8x128xf32>
    %305 = arith.addf %304, %303 : vector<8x128xf32>
    %306 = arith.divf %304, %305 : vector<8x128xf32>
    %307 = math.tanh %301 : vector<8x128xf32>
    %308 = vector.extract_strided_slice %306 {offsets = [0, 0], sizes = [8, 32], strides = [1, 1]} : vector<8x128xf32> to vector<8x32xf32>
    %309 = vector.extract_strided_slice %306 {offsets = [0, 32], sizes = [8, 32], strides = [1, 1]} : vector<8x128xf32> to vector<8x32xf32>
    %310 = vector.extract_strided_slice %307 {offsets = [0, 64], sizes = [8, 32], strides = [1, 1]} : vector<8x128xf32> to vector<8x32xf32>
    %311 = vector.extract_strided_slice %306 {offsets = [0, 96], sizes = [8, 32], strides = [1, 1]} : vector<8x128xf32> to vector<8x32xf32>
    %312 = arith.mulf %309, %289 : vector<8x32xf32>
    %313 = arith.mulf %308, %310 : vector<8x32xf32>
    %314 = arith.addf %312, %313 : vector<8x32xf32>
    %315 = math.tanh %314 : vector<8x32xf32>
    %316 = arith.mulf %311, %315 : vector<8x32xf32>
    %c8_i32 = arith.constant 8 : i32
    %317 = vector.broadcast %c8_i32 : i32 to vector<8x1xi32>
    %318 = arith.cmpi eq, %121, %317 : vector<8x1xi32>
    %319 = vector.shape_cast %318 : vector<8x1xi1> to vector<8x1xi1>
    %320 = vector.broadcast %319 : vector<8x1xi1> to vector<8x32xi1>
    %321 = arith.select %320, %316, %296 : vector<8x32xi1>, vector<8x32xf32>
    %322 = arith.truncf %321 : vector<8x32xf32> to vector<8x32xbf16>
    %c0_112 = arith.constant 0 : index
    %c0_113 = arith.constant 0 : index
    %323 = vector.load %arg9[%c0_112, %c0_113] : memref<32x128xbf16, #tpu.memory_space<vmem>>, vector<32x128xbf16>
    %cst_114 = arith.constant dense<0.000000e+00> : vector<8x128xf32>
    %324 = tpu.matmul %322, %323, %cst_114 {dimension_numbers = #tpu.dot_dimension_numbers<[1], [0], [0], [1], [0, 0, 1, 1], [], []>} : vector<8x32xbf16>, vector<32x128xbf16>, vector<8x128xf32> -> vector<8x128xf32>
    %325 = arith.addf %117, %324 : vector<8x128xf32>
    %c0_115 = arith.constant 0 : index
    %c0_116 = arith.constant 0 : index
    %326 = vector.load %arg10[%c0_115, %c0_116] : memref<1x128xf32, #tpu.memory_space<vmem>>, vector<1x128xf32>
    %327 = vector.broadcast %326 : vector<1x128xf32> to vector<8x128xf32>
    %328 = arith.addf %325, %327 : vector<8x128xf32>
    %cst_117 = arith.constant 0.000000e+00 : f32
    %329 = vector.broadcast %cst_117 : f32 to vector<8x128xf32>
    %330 = arith.maximumf %328, %329 : vector<8x128xf32>
    %331 = arith.truncf %330 : vector<8x128xf32> to vector<8x128xbf16>
    %c0_118 = arith.constant 0 : index
    %c0_119 = arith.constant 0 : index
    %332 = vector.load %arg11[%c0_118, %c0_119] : memref<128x128xbf16, #tpu.memory_space<vmem>>, vector<128x128xbf16>
    %cst_120 = arith.constant dense<0.000000e+00> : vector<8x128xf32>
    %333 = tpu.matmul %331, %332, %cst_120 {dimension_numbers = #tpu.dot_dimension_numbers<[1], [0], [0], [1], [0, 0, 1, 1], [], []>} : vector<8x128xbf16>, vector<128x128xbf16>, vector<8x128xf32> -> vector<8x128xf32>
    %c0_121 = arith.constant 0 : index
    %c0_122 = arith.constant 0 : index
    %334 = vector.load %arg12[%c0_121, %c0_122] : memref<1x128xf32, #tpu.memory_space<vmem>>, vector<1x128xf32>
    %335 = vector.broadcast %334 : vector<1x128xf32> to vector<8x128xf32>
    %336 = arith.addf %333, %335 : vector<8x128xf32>
    %c0_123 = arith.constant 0 : index
    %c0_124 = arith.constant 0 : index
    %337 = vector.load %arg13[%c0_123, %c0_124] : memref<8x128xf32, #tpu.memory_space<vmem>>, vector<8x128xf32>
    tpu.vector_store %arg13[%c0_123, %c0_124], %336 {strides = array<i32>} : memref<8x128xf32, #tpu.memory_space<vmem>>, vector<8x128xf32>,
    return
  }
}

</mosaic_0001>

<llo_original>
// kernel: imgques_forward.1
$region0: #{imgques_forward.1}
  #allocation0 [shape = 'u32[]', space=smem, size = 0x4, offset = 0x4, fixed_abs, tag = 'smem constant byte address 0x4 - core index']
  #allocation1 [shape = 'u32[144,128]{1,0:T(1,128)}', space=vmem, size = 0x12000, scoped, tag = 'internal scratch']
  #allocation2 [shape = 'f32[64,128]{1,0:T(8,128)}', space=vmem, size = 0x8000, scoped, tag = 'scratch operand']
  %s0 = inlined_call_operand.vmem [shape: s32[64,1], index: 0, kind: input, shape index: {}]
  %s1 = inlined_call_operand.vmem [shape: s32[8,1], index: 1, kind: input, shape index: {}]
  %s2 = inlined_call_operand.vmem [shape: bf16[128,128], index: 2, kind: input, shape index: {}]
  %s3 = inlined_call_operand.vmem [shape: bf16[128,8], index: 3, kind: input, shape index: {}]
  %s4 = inlined_call_operand.vmem [shape: f32[1,8], index: 4, kind: input, shape index: {}]
  %s5 = inlined_call_operand.vmem [shape: bf16[128,128], index: 5, kind: input, shape index: {}]
  %s6 = inlined_call_operand.vmem [shape: f32[1,128], index: 6, kind: input, shape index: {}]
  %s7 = inlined_call_operand.vmem [shape: bf16[32,128], index: 7, kind: input, shape index: {}]
  %s8 = inlined_call_operand.vmem [shape: bf16[16,8,128], index: 8, kind: input, shape index: {}]
  %s9 = inlined_call_operand.vmem [shape: bf16[32,128], index: 9, kind: input, shape index: {}]
  %s10 = inlined_call_operand.vmem [shape: f32[1,128], index: 10, kind: input, shape index: {}]
  %s11 = inlined_call_operand.vmem [shape: bf16[128,128], index: 11, kind: input, shape index: {}]
  %s12 = inlined_call_operand.vmem [shape: f32[1,128], index: 12, kind: input, shape index: {}]
  %s13 = inlined_call_operand.vmem [shape: f32[8,128], index: 13, kind: output, shape index: {}]
  %s14 = sld [smem:[#allocation0]]
  $region62: #{imgques_forward.1} parent=0
    _
  %s16 = ssub.s32 1, %s14
  %s17 = scalar_select 0, %s16, %s14
  // Predicated region
  $region2: #{imgques_forward.1} parent=0 // pred_check
    _
  $region3: #{imgques_forward.1} parent=0 // pred_check_branch
    %19 = sbr.rel (0) target = $region5
  $region4: #{imgques_forward.1} parent=0 // pred_region
    _
  $region5: #{imgques_forward.1} parent=0 // pred_fallthru
    _
  // Predicated region
  $region6: #{imgques_forward.1} parent=0 // pred_check
    _
  $region7: #{imgques_forward.1} parent=0 // pred_check_branch
    %21 = sbr.rel (0) target = $region9
  $region8: #{imgques_forward.1} parent=0 // pred_region
    _
  $region9: #{imgques_forward.1} parent=0 // pred_fallthru
    _
  // Predicated region
  $region10: #{imgques_forward.1} parent=0 // pred_check
    _
  $region11: #{imgques_forward.1} parent=0 // pred_check_branch
    %23 = sbr.rel (0) target = $region13
  $region12: #{imgques_forward.1} parent=0 // pred_region
    _
  $region13: #{imgques_forward.1} parent=0 // pred_fallthru
    _
  // Predicated region
  $region14: #{imgques_forward.1} parent=0 // pred_check
    _
  $region15: #{imgques_forward.1} parent=0 // pred_check_branch
    %25 = sbr.rel (0) target = $region17
  $region16: #{imgques_forward.1} parent=0 // pred_region
    _
  $region17: #{imgques_forward.1} parent=0 // pred_fallthru
    _
  // Predicated region
  $region18: #{imgques_forward.1} parent=0 // pred_check
    _
  $region19: #{imgques_forward.1} parent=0 // pred_check_branch
    %27 = sbr.rel (0) target = $region21
  $region20: #{imgques_forward.1} parent=0 // pred_region
    _
  $region21: #{imgques_forward.1} parent=0 // pred_fallthru
    _
  // Predicated region
  $region22: #{imgques_forward.1} parent=0 // pred_check
    _
  $region23: #{imgques_forward.1} parent=0 // pred_check_branch
    %29 = sbr.rel (0) target = $region25
  $region24: #{imgques_forward.1} parent=0 // pred_region
    _
  $region25: #{imgques_forward.1} parent=0 // pred_fallthru
    _
  // Predicated region
  $region26: #{imgques_forward.1} parent=0 // pred_check
    _
  $region27: #{imgques_forward.1} parent=0 // pred_check_branch
    %31 = sbr.rel (0) target = $region29
  $region28: #{imgques_forward.1} parent=0 // pred_region
    _
  $region29: #{imgques_forward.1} parent=0 // pred_fallthru
    _
  // Predicated region
  $region30: #{imgques_forward.1} parent=0 // pred_check
    _
  $region31: #{imgques_forward.1} parent=0 // pred_check_branch
    %33 = sbr.rel (0) target = $region33
  $region32: #{imgques_forward.1} parent=0 // pred_region
    _
  $region33: #{imgques_forward.1} parent=0 // pred_fallthru
    _
  // Predicated region
  $region34: #{imgques_forward.1} parent=0 // pred_check
    _
  $region35: #{imgques_forward.1} parent=0 // pred_check_branch
    %35 = sbr.rel (0) target = $region37
  $region36: #{imgques_forward.1} parent=0 // pred_region
    _
  $region37: #{imgques_forward.1} parent=0 // pred_fallthru
    _
  // Predicated region
  $region38: #{imgques_forward.1} parent=0 // pred_check
    _
  $region39: #{imgques_forward.1} parent=0 // pred_check_branch
    %37 = sbr.rel (0) target = $region41
  $region40: #{imgques_forward.1} parent=0 // pred_region
    _
  $region41: #{imgques_forward.1} parent=0 // pred_fallthru
    _
  // Predicated region
  $region42: #{imgques_forward.1} parent=0 // pred_check
    _
  $region43: #{imgques_forward.1} parent=0 // pred_check_branch
    %39 = sbr.rel (0) target = $region45
  $region44: #{imgques_forward.1} parent=0 // pred_region
    _
  $region45: #{imgques_forward.1} parent=0 // pred_fallthru
    _
  // Predicated region
  $region46: #{imgques_forward.1} parent=0 // pred_check
    _
  $region47: #{imgques_forward.1} parent=0 // pred_check_branch
    %41 = sbr.rel (0) target = $region49
  $region48: #{imgques_forward.1} parent=0 // pred_region
    _
  $region49: #{imgques_forward.1} parent=0 // pred_fallthru
    _
  // Predicated region
  $region50: #{imgques_forward.1} parent=0 // pred_check
    _
  $region51: #{imgques_forward.1} parent=0 // pred_check_branch
    %43 = sbr.rel (0) target = $region53
  $region52: #{imgques_forward.1} parent=0 // pred_region
    _
  $region53: #{imgques_forward.1} parent=0 // pred_fallthru
    _
  %v45 = vld [vmem:[%s0] sm:$0xff]
  %v46 = vld [vmem:[%s0 + $0x8] sm:$0xff]
  %v47 = vld [vmem:[%s0 + $0x10] sm:$0xff]
  %v48 = vld [vmem:[%s0 + $0x18] sm:$0xff]
  %v49 = vld [vmem:[%s0 + $0x20] sm:$0xff]
  %v50 = vld [vmem:[%s0 + $0x28] sm:$0xff]
  %v51 = vld [vmem:[%s0 + $0x30] sm:$0xff]
  %v52 = vld [vmem:[%s0 + $0x38] sm:$0xff]
  %v53 = vlaneseq
  %v54 = vand.u32 %v53, 127
  %55 = vset.pattern.permute.xlu0 0
  %56 = vperm.xlu0 %55, %v45
  %v57 = vpop.permute.xlu0 %56
  %58 = vset.pattern.permute.xlu0 0
  %59 = vperm.xlu0 %58, %v46
  %v60 = vpop.permute.xlu0 %59
  %61 = vset.pattern.permute.xlu0 0
  %62 = vperm.xlu0 %61, %v47
  %v63 = vpop.permute.xlu0 %62
  %64 = vset.pattern.permute.xlu0 0
  %65 = vperm.xlu0 %64, %v48
  %v66 = vpop.permute.xlu0 %65
  %67 = vset.pattern.permute.xlu0 0
  %68 = vperm.xlu0 %67, %v49
  %v69 = vpop.permute.xlu0 %68
  %70 = vset.pattern.permute.xlu0 0
  %71 = vperm.xlu0 %70, %v50
  %v72 = vpop.permute.xlu0 %71
  %73 = vset.pattern.permute.xlu0 0
  %74 = vperm.xlu0 %73, %v51
  %v75 = vpop.permute.xlu0 %74
  %76 = vset.pattern.permute.xlu0 0
  %77 = vperm.xlu0 %76, %v52
  %v78 = vpop.permute.xlu0 %77
  %vm79 = vcmp.eq.s32.totalorder %v54, %v57
  %vm80 = vcmp.eq.s32.totalorder %v54, %v60
  %vm81 = vcmp.eq.s32.totalorder %v54, %v63
  %vm82 = vcmp.eq.s32.totalorder %v54, %v66
  %vm83 = vcmp.eq.s32.totalorder %v54, %v69
  %vm84 = vcmp.eq.s32.totalorder %v54, %v72
  %vm85 = vcmp.eq.s32.totalorder %v54, %v75
  %vm86 = vcmp.eq.s32.totalorder %v54, %v78
  %v87 = vsel %vm79, 1, 0
  %v88 = vsel %vm80, 1, 0
  %v89 = vsel %vm81, 1, 0
  %v90 = vsel %vm82, 1, 0
  %v91 = vsel %vm83, 1, 0
  %v92 = vsel %vm84, 1, 0
  %v93 = vsel %vm85, 1, 0
  %v94 = vsel %vm86, 1, 0
  %v95 = vcvt.s32.f32 %v87
  %v96 = vcvt.s32.f32 %v88
  %v97 = vcvt.s32.f32 %v89
  %v98 = vcvt.s32.f32 %v90
  %v99 = vcvt.s32.f32 %v91
  %v100 = vcvt.s32.f32 %v92
  %v101 = vcvt.s32.f32 %v93
  %v102 = vcvt.s32.f32 %v94
  %v103 = vpack.c.bf16 %v96, %v95
  %v104 = vpack.c.bf16 %v98, %v97
  %v105 = vpack.c.bf16 %v100, %v99
  %v106 = vpack.c.bf16 %v102, %v101
  %v107 = vld [vmem:[%s5] sm:$0xf]
  %v108 = vld [vmem:[%s5 + $0x4] sm:$0xf]
  %v109 = vld [vmem:[%s5 + $0x8] sm:$0xf]
  %v110 = vld [vmem:[%s5 + $0xc] sm:$0xf]
  %v111 = vld [vmem:[%s5 + $0x10] sm:$0xf]
  %v112 = vld [vmem:[%s5 + $0x14] sm:$0xf]
  %v113 = vld [vmem:[%s5 + $0x18] sm:$0xf]
  %v114 = vld [vmem:[%s5 + $0x1c] sm:$0xf]
  %v115 = vld [vmem:[%s5 + $0x20] sm:$0xf]
  %v116 = vld [vmem:[%s5 + $0x24] sm:$0xf]
  %v117 = vld [vmem:[%s5 + $0x28] sm:$0xf]
  %v118 = vld [vmem:[%s5 + $0x2c] sm:$0xf]
  %v119 = vld [vmem:[%s5 + $0x30] sm:$0xf]
  %v120 = vld [vmem:[%s5 + $0x34] sm:$0xf]
  %v121 = vld [vmem:[%s5 + $0x38] sm:$0xf]
  %v122 = vld [vmem:[%s5 + $0x3c] sm:$0xf]
  %v123 = vld [vmem:[%s6] sm:$0x1]
  %v125 = vlaneseq
  %v126 = vshrl.u32 %v125, 7
  %v127 = vsub.s32 0, %v126
  %v128 = vrot.slane %v123, %v127
  %v146 = vunpack.c.l.b16 %v107
  %v147 = vunpack.c.l.b16 %v108
  %v148 = vunpack.c.l.b16 %v109
  %v149 = vunpack.c.l.b16 %v110
  %v150 = vunpack.c.l.b16 %v111
  %v151 = vunpack.c.l.b16 %v112
  %v152 = vunpack.c.l.b16 %v113
  %v153 = vunpack.c.l.b16 %v114
  %v154 = vunpack.c.l.b16 %v115
  %v155 = vunpack.c.l.b16 %v116
  %v156 = vunpack.c.l.b16 %v117
  %v157 = vunpack.c.l.b16 %v118
  %v158 = vunpack.c.l.b16 %v119
  %v159 = vunpack.c.l.b16 %v120
  %v160 = vunpack.c.l.b16 %v121
  %v161 = vunpack.c.l.b16 %v122
  %v162 = vpack.c.b16 %v147, %v146
  %v163 = vpack.c.b16 %v149, %v148
  %v164 = vpack.c.b16 %v151, %v150
  %v165 = vpack.c.b16 %v153, %v152
  %v166 = vpack.c.b16 %v155, %v154
  %v167 = vpack.c.b16 %v157, %v156
  %v168 = vpack.c.b16 %v159, %v158
  %v169 = vpack.c.b16 %v161, %v160
  %178 = vmatprep.subr.bf16.mxu0 0
  %179 = vmatpush1.bf16.msra.mxu0 %v162
  %180 = vmatprep.subr.bf16.mxu0 0
  %181 = vmatpush1.bf16.msra.mxu0 %v163
  %182 = vmatprep.subr.bf16.mxu0 0
  %183 = vmatpush1.bf16.msra.mxu0 %v164
  %184 = vmatprep.subr.bf16.mxu0 0
  %185 = vmatpush1.bf16.msra.mxu0 %v165
  %186 = vmatprep.subr.bf16.mxu0 0
  %187 = vmatpush1.bf16.msra.mxu0 %v166
  %188 = vmatprep.subr.bf16.mxu0 0
  %189 = vmatpush1.bf16.msra.mxu0 %v167
  %190 = vmatprep.subr.bf16.mxu0 0
  %191 = vmatpush1.bf16.msra.mxu0 %v168
  %192 = vmatprep.subr.bf16.mxu0 0
  %193 = vmatpush1.bf16.msra.mxu0 %v169
  %194 = vmatprep.subr.bf16.mxu0 0
  %195 = vmatpush1.bf16.msra.mxu0 0
  %196 = vmatprep.subr.bf16.mxu0 0
  %197 = vmatpush1.bf16.msra.mxu0 0
  %198 = vmatprep.subr.bf16.mxu0 0
  %199 = vmatpush1.bf16.msra.mxu0 0
  %200 = vmatprep.subr.bf16.mxu0 0
  %201 = vmatpush1.bf16.msra.mxu0 0
  %202 = vmatprep.subr.bf16.mxu0 0
  %203 = vmatpush1.bf16.msra.mxu0 0
  %204 = vmatprep.subr.bf16.mxu0 0
  %205 = vmatpush1.bf16.msra.mxu0 0
  %206 = vmatprep.subr.bf16.mxu0 0
  %207 = vmatpush1.bf16.msra.mxu0 0
  %208 = vmatprep.subr.bf16.mxu0 0
  %209 = vmatpush1.bf16.msra.mxu0 0
  %210 = vmatprep.mubr.bf16.mxu0 0
  %211 = vmatmul.mubr.bf16.gmra.mrb[0].mxu0 %v103
  %v212 = vpop.f32.mrb[0].mxu0
  %v213 = vadd.f32 %v128, %v212
  %v214 = vpop.f32.mrb[0].mxu0
  %v215 = vpop.f32.mrb[0].mxu0
  %v216 = vadd.f32 %v128, %v215
  %v217 = vpop.f32.mrb[0].mxu0
  %218 = vmatprep.mubr.bf16.mxu0 0
  %219 = vmatmul.mubr.bf16.gmra.mrb[0].mxu0 %v104
  %v220 = vpop.f32.mrb[0].mxu0
  %v221 = vadd.f32 %v128, %v220
  %v222 = vpop.f32.mrb[0].mxu0
  %v223 = vpop.f32.mrb[0].mxu0
  %v224 = vadd.f32 %v128, %v223
  %v225 = vpop.f32.mrb[0].mxu0
  %226 = vmatprep.mubr.bf16.mxu0 0
  %227 = vmatmul.mubr.bf16.gmra.mrb[0].mxu0 %v105
  %v228 = vpop.f32.mrb[0].mxu0
  %v229 = vadd.f32 %v128, %v228
  %v230 = vpop.f32.mrb[0].mxu0
  %v231 = vpop.f32.mrb[0].mxu0
  %v232 = vadd.f32 %v128, %v231
  %v233 = vpop.f32.mrb[0].mxu0
  %234 = vmatprep.mubr.bf16.mxu0 0
  %235 = vmatmul.mubr.bf16.gmra.mrb[0].mxu0 %v106
  %v236 = vpop.f32.mrb[0].mxu0
  %v237 = vadd.f32 %v128, %v236
  %v238 = vpop.f32.mrb[0].mxu0
  %v239 = vpop.f32.mrb[0].mxu0
  %v240 = vadd.f32 %v128, %v239
  %v241 = vpop.f32.mrb[0].mxu0
  %242 = vdwg.mxu0
  %243 = vst [vmem:[#allocation2] sm:$0xff] %v213
  %244 = vst [vmem:[#allocation2 + $0x8] sm:$0xff] %v216
  %245 = vst [vmem:[#allocation2 + $0x10] sm:$0xff] %v221
  %246 = vst [vmem:[#allocation2 + $0x18] sm:$0xff] %v224
  %247 = vst [vmem:[#allocation2 + $0x20] sm:$0xff] %v229
  %248 = vst [vmem:[#allocation2 + $0x28] sm:$0xff] %v232
  %249 = vst [vmem:[#allocation2 + $0x30] sm:$0xff] %v237
  %250 = vst [vmem:[#allocation2 + $0x38] sm:$0xff] %v240
  %v251 = vld [vmem:[%s2] sm:$0xf]
  %v252 = vld [vmem:[%s2 + $0x4] sm:$0xf]
  %v253 = vld [vmem:[%s2 + $0x8] sm:$0xf]
  %v254 = vld [vmem:[%s2 + $0xc] sm:$0xf]
  %v255 = vld [vmem:[%s2 + $0x10] sm:$0xf]
  %v256 = vld [vmem:[%s2 + $0x14] sm:$0xf]
  %v257 = vld [vmem:[%s2 + $0x18] sm:$0xf]
  %v258 = vld [vmem:[%s2 + $0x1c] sm:$0xf]
  %v259 = vld [vmem:[%s2 + $0x20] sm:$0xf]
  %v260 = vld [vmem:[%s2 + $0x24] sm:$0xf]
  %v261 = vld [vmem:[%s2 + $0x28] sm:$0xf]
  %v262 = vld [vmem:[%s2 + $0x2c] sm:$0xf]
  %v263 = vld [vmem:[%s2 + $0x30] sm:$0xf]
  %v264 = vld [vmem:[%s2 + $0x34] sm:$0xf]
  %v265 = vld [vmem:[%s2 + $0x38] sm:$0xf]
  %v266 = vld [vmem:[%s2 + $0x3c] sm:$0xf]
  %v267 = vld [vmem:[%s3] sm:$0xf]
  %v268 = vld [vmem:[%s3 + $0x4] sm:$0xf]
  %v269 = vld [vmem:[%s3 + $0x8] sm:$0xf]
  %v270 = vld [vmem:[%s3 + $0xc] sm:$0xf]
  %v271 = vld [vmem:[%s3 + $0x10] sm:$0xf]
  %v272 = vld [vmem:[%s3 + $0x14] sm:$0xf]
  %v273 = vld [vmem:[%s3 + $0x18] sm:$0xf]
  %v274 = vld [vmem:[%s3 + $0x1c] sm:$0xf]
  %v275 = vld [vmem:[%s3 + $0x20] sm:$0xf]
  %v276 = vld [vmem:[%s3 + $0x24] sm:$0xf]
  %v277 = vld [vmem:[%s3 + $0x28] sm:$0xf]
  %v278 = vld [vmem:[%s3 + $0x2c] sm:$0xf]
  %v279 = vld [vmem:[%s3 + $0x30] sm:$0xf]
  %v280 = vld [vmem:[%s3 + $0x34] sm:$0xf]
  %v281 = vld [vmem:[%s3 + $0x38] sm:$0xf]
  %v282 = vld [vmem:[%s3 + $0x3c] sm:$0xf]
  %v283 = vld [vmem:[%s4] sm:$0x1]
  %v285 = vlaneseq
  %v286 = vshrl.u32 %v285, 7
  %v287 = vsub.s32 0, %v286
  %v288 = vrot.slane %v283, %v287
  %v306 = vunpack.c.l.b16 %v251
  %v307 = vunpack.c.l.b16 %v252
  %v308 = vunpack.c.l.b16 %v253
  %v309 = vunpack.c.l.b16 %v254
  %v310 = vunpack.c.l.b16 %v255
  %v311 = vunpack.c.l.b16 %v256
  %v312 = vunpack.c.l.b16 %v257
  %v313 = vunpack.c.l.b16 %v258
  %v314 = vunpack.c.l.b16 %v259
  %v315 = vunpack.c.l.b16 %v260
  %v316 = vunpack.c.l.b16 %v261
  %v317 = vunpack.c.l.b16 %v262
  %v318 = vunpack.c.l.b16 %v263
  %v319 = vunpack.c.l.b16 %v264
  %v320 = vunpack.c.l.b16 %v265
  %v321 = vunpack.c.l.b16 %v266
  %v322 = vpack.c.b16 %v307, %v306
  %v323 = vpack.c.b16 %v309, %v308
  %v324 = vpack.c.b16 %v311, %v310
  %v325 = vpack.c.b16 %v313, %v312
  %v326 = vpack.c.b16 %v315, %v314
  %v327 = vpack.c.b16 %v317, %v316
  %v328 = vpack.c.b16 %v319, %v318
  %v329 = vpack.c.b16 %v321, %v320
  %v354 = vunpack.c.l.b16 %v267
  %v355 = vunpack.c.l.b16 %v268
  %v356 = vunpack.c.l.b16 %v269
  %v357 = vunpack.c.l.b16 %v270
  %v358 = vunpack.c.l.b16 %v271
  %v359 = vunpack.c.l.b16 %v272
  %v360 = vunpack.c.l.b16 %v273
  %v361 = vunpack.c.l.b16 %v274
  %v362 = vunpack.c.l.b16 %v275
  %v363 = vunpack.c.l.b16 %v276
  %v364 = vunpack.c.l.b16 %v277
  %v365 = vunpack.c.l.b16 %v278
  %v366 = vunpack.c.l.b16 %v279
  %v367 = vunpack.c.l.b16 %v280
  %v368 = vunpack.c.l.b16 %v281
  %v369 = vunpack.c.l.b16 %v282
  %v370 = vpack.c.b16 %v355, %v354
  %v371 = vpack.c.b16 %v357, %v356
  %v372 = vpack.c.b16 %v359, %v358
  %v373 = vpack.c.b16 %v361, %v360
  %v374 = vpack.c.b16 %v363, %v362
  %v375 = vpack.c.b16 %v365, %v364
  %v376 = vpack.c.b16 %v367, %v366
  %v377 = vpack.c.b16 %v369, %v368
  %386 = vmatprep.subr.bf16.mxu0 0
  %387 = vmatpush1.bf16.msra.mxu0 %v370
  %388 = vmatprep.subr.bf16.mxu0 0
  %389 = vmatpush1.bf16.msra.mxu0 %v371
  %390 = vmatprep.subr.bf16.mxu0 0
  %391 = vmatpush1.bf16.msra.mxu0 %v372
  %392 = vmatprep.subr.bf16.mxu0 0
  %393 = vmatpush1.bf16.msra.mxu0 %v373
  %394 = vmatprep.subr.bf16.mxu0 0
  %395 = vmatpush1.bf16.msra.mxu0 %v374
  %396 = vmatprep.subr.bf16.mxu0 0
  %397 = vmatpush1.bf16.msra.mxu0 %v375
  %398 = vmatprep.subr.bf16.mxu0 0
  %399 = vmatpush1.bf16.msra.mxu0 %v376
  %400 = vmatprep.subr.bf16.mxu0 0
  %401 = vmatpush1.bf16.msra.mxu0 %v377
  %402 = vmatprep.subr.bf16.mxu0 0
  %403 = vmatpush1.bf16.msra.mxu0 0
  %404 = vmatprep.subr.bf16.mxu0 0
  %405 = vmatpush1.bf16.msra.mxu0 0
  %406 = vmatprep.subr.bf16.mxu0 0
  %407 = vmatpush1.bf16.msra.mxu0 0
  %408 = vmatprep.subr.bf16.mxu0 0
  %409 = vmatpush1.bf16.msra.mxu0 0
  %410 = vmatprep.subr.bf16.mxu0 0
  %411 = vmatpush1.bf16.msra.mxu0 0
  %412 = vmatprep.subr.bf16.mxu0 0
  %413 = vmatpush1.bf16.msra.mxu0 0
  %414 = vmatprep.subr.bf16.mxu0 0
  %415 = vmatpush1.bf16.msra.mxu0 0
  %416 = vmatprep.subr.bf16.mxu0 0
  %417 = vmatpush1.bf16.msra.mxu0 0
  %418 = vmatprep.mubr.bf16.mxu0 0
  %419 = vmatmul.mubr.bf16.gmra.mrb[0].mxu0 %v322
  %v420 = vpop.f32.mrb[0].mxu0
  %v421 = vadd.f32 %v288, %v420
  %v422 = vpop.f32.mrb[0].mxu0
  %v423 = vpop.f32.mrb[0].mxu0
  %v424 = vadd.f32 %v288, %v423
  %v425 = vpop.f32.mrb[0].mxu0
  %426 = vmatprep.mubr.bf16.mxu0 0
  %427 = vmatmul.mubr.bf16.gmra.mrb[0].mxu0 %v323
  %v428 = vpop.f32.mrb[0].mxu0
  %v429 = vadd.f32 %v288, %v428
  %v430 = vpop.f32.mrb[0].mxu0
  %v431 = vpop.f32.mrb[0].mxu0
  %v432 = vadd.f32 %v288, %v431
  %v433 = vpop.f32.mrb[0].mxu0
  %434 = vmatprep.mubr.bf16.mxu0 0
  %435 = vmatmul.mubr.bf16.gmra.mrb[0].mxu0 %v324
  %v436 = vpop.f32.mrb[0].mxu0
  %v437 = vadd.f32 %v288, %v436
  %v438 = vpop.f32.mrb[0].mxu0
  %v439 = vpop.f32.mrb[0].mxu0
  %v440 = vadd.f32 %v288, %v439
  %v441 = vpop.f32.mrb[0].mxu0
  %442 = vmatprep.mubr.bf16.mxu0 0
  %443 = vmatmul.mubr.bf16.gmra.mrb[0].mxu0 %v325
  %v444 = vpop.f32.mrb[0].mxu0
  %v445 = vadd.f32 %v288, %v444
  %v446 = vpop.f32.mrb[0].mxu0
  %v447 = vpop.f32.mrb[0].mxu0
  %v448 = vadd.f32 %v288, %v447
  %v449 = vpop.f32.mrb[0].mxu0
  %450 = vmatprep.mubr.bf16.mxu0 0
  %451 = vmatmul.mubr.bf16.gmra.mrb[0].mxu0 %v326
  %v452 = vpop.f32.mrb[0].mxu0
  %v453 = vadd.f32 %v288, %v452
  %v454 = vpop.f32.mrb[0].mxu0
  %v455 = vpop.f32.mrb[0].mxu0
  %v456 = vadd.f32 %v288, %v455
  %v457 = vpop.f32.mrb[0].mxu0
  %458 = vmatprep.mubr.bf16.mxu0 0
  %459 = vmatmul.mubr.bf16.gmra.mrb[0].mxu0 %v327
  %v460 = vpop.f32.mrb[0].mxu0
  %v461 = vadd.f32 %v288, %v460
  %v462 = vpop.f32.mrb[0].mxu0
  %v463 = vpop.f32.mrb[0].mxu0
  %v464 = vadd.f32 %v288, %v463
  %v465 = vpop.f32.mrb[0].mxu0
  %466 = vmatprep.mubr.bf16.mxu0 0
  %467 = vmatmul.mubr.bf16.gmra.mrb[0].mxu0 %v328
  %v468 = vpop.f32.mrb[0].mxu0
  %v469 = vadd.f32 %v288, %v468
  %v470 = vpop.f32.mrb[0].mxu0
  %v471 = vpop.f32.mrb[0].mxu0
  %v472 = vadd.f32 %v288, %v471
  %v473 = vpop.f32.mrb[0].mxu0
  %474 = vmatprep.mubr.bf16.mxu0 0
  %475 = vmatmul.mubr.bf16.gmra.mrb[0].mxu0 %v329
  %v476 = vpop.f32.mrb[0].mxu0
  %v477 = vadd.f32 %v288, %v476
  %v478 = vpop.f32.mrb[0].mxu0
  %v479 = vpop.f32.mrb[0].mxu0
  %v480 = vadd.f32 %v288, %v479
  %v481 = vpop.f32.mrb[0].mxu0
  %482 = vdwg.mxu0
  %v483 = vmax.f32 %v421, 0.0
  %v484 = vmax.f32 %v424, 0.0
  %v485 = vmax.f32 %v429, 0.0
  %v486 = vmax.f32 %v432, 0.0
  %v487 = vmax.f32 %v437, 0.0
  %v488 = vmax.f32 %v440, 0.0
  %v489 = vmax.f32 %v445, 0.0
  %v490 = vmax.f32 %v448, 0.0
  %v491 = vmax.f32 %v453, 0.0
  %v492 = vmax.f32 %v456, 0.0
  %v493 = vmax.f32 %v461, 0.0
  %v494 = vmax.f32 %v464, 0.0
  %v495 = vmax.f32 %v469, 0.0
  %v496 = vmax.f32 %v472, 0.0
  %v497 = vmax.f32 %v477, 0.0
  %v498 = vmax.f32 %v480, 0.0
  %v499 = vpack.c.bf16 %v483, %v483
  %v500 = vld [vmem:[%s8] sm:$0xf]
  %v501 = vpack.c.bf16 %v484, %v484
  %s502 = scalar_lea.vmem %s8, 4
  %v503 = vld [vmem:[%s502] sm:$0xf]
  %vm504 = vcmask 64512
  %v506 = vsel %vm504, %v501, 0
  %vm508 = vcmask 1043456
  %v510 = vsel %vm508, %v503, 0
  %512 = vmatprep.subr.bf16.mxu0 0
  %513 = vmatpush1.bf16.msra.mxu0 %v510
  %514 = vmatprep.subr.bf16.mxu0 0
  %515 = vmatpush1.bf16.msra.mxu0 0
  %516 = vmatprep.subr.bf16.mxu0 0
  %517 = vmatpush1.bf16.msra.mxu0 0
  %518 = vmatprep.subr.bf16.mxu0 0
  %519 = vmatpush1.bf16.msra.mxu0 0
  %520 = vmatprep.subr.bf16.mxu0 0
  %521 = vmatpush1.bf16.msra.mxu0 0
  %522 = vmatprep.subr.bf16.mxu0 0
  %523 = vmatpush1.bf16.msra.mxu0 0
  %524 = vmatprep.subr.bf16.mxu0 0
  %525 = vmatpush1.bf16.msra.mxu0 0
  %526 = vmatprep.subr.bf16.mxu0 0
  %527 = vmatpush1.bf16.msra.mxu0 0
  %528 = vmatprep.subr.bf16.mxu0 0
  %529 = vmatpush1.bf16.msra.mxu0 0
  %530 = vmatprep.subr.bf16.mxu0 0
  %531 = vmatpush1.bf16.msra.mxu0 0
  %532 = vmatprep.subr.bf16.mxu0 0
  %533 = vmatpush1.bf16.msra.mxu0 0
  %534 = vmatprep.subr.bf16.mxu0 0
  %535 = vmatpush1.bf16.msra.mxu0 0
  %536 = vmatprep.subr.bf16.mxu0 0
  %537 = vmatpush1.bf16.msra.mxu0 0
  %538 = vmatprep.subr.bf16.mxu0 0
  %539 = vmatpush1.bf16.msra.mxu0 0
  %540 = vmatprep.subr.bf16.mxu0 0
  %541 = vmatpush1.bf16.msra.mxu0 0
  %542 = vmatprep.subr.bf16.mxu0 0
  %543 = vmatpush1.bf16.msra.mxu0 0
  %544 = vmatprep.mubr.bf16.mxu0 0
  %545 = vmatmul.mubr.bf16.gmra.mrb[0].mxu0 %v506
  %v546 = vpop.f32.mrb[0].mxu0
  %v547 = vadd.f32 0.0, %v546
  %v548 = vpop.f32.mrb[0].mxu0
  %v549 = vpop.f32.mrb[0].mxu0
  %v550 = vpop.f32.mrb[0].mxu0
  %551 = vdwg.mxu0
  %v553 = vsel %vm504, %v499, 0
  %v556 = vsel %vm508, %v500, 0
  %558 = vmatprep.subr.bf16.mxu0 0
  %559 = vmatpush1.bf16.msra.mxu0 %v556
  %560 = vmatprep.subr.bf16.mxu0 0
  %561 = vmatpush1.bf16.msra.mxu0 0
  %562 = vmatprep.subr.bf16.mxu0 0
  %563 = vmatpush1.bf16.msra.mxu0 0
  %564 = vmatprep.subr.bf16.mxu0 0
  %565 = vmatpush1.bf16.msra.mxu0 0
  %566 = vmatprep.subr.bf16.mxu0 0
  %567 = vmatpush1.bf16.msra.mxu0 0
  %568 = vmatprep.subr.bf16.mxu0 0
  %569 = vmatpush1.bf16.msra.mxu0 0
  %570 = vmatprep.subr.bf16.mxu0 0
  %571 = vmatpush1.bf16.msra.mxu0 0
  %572 = vmatprep.subr.bf16.mxu0 0
  %573 = vmatpush1.bf16.msra.mxu0 0
  %574 = vmatprep.subr.bf16.mxu0 0
  %575 = vmatpush1.bf16.msra.mxu0 0
  %576 = vmatprep.subr.bf16.mxu0 0
  %577 = vmatpush1.bf16.msra.mxu0 0
  %578 = vmatprep.subr.bf16.mxu0 0
  %579 = vmatpush1.bf16.msra.mxu0 0
  %580 = vmatprep.subr.bf16.mxu0 0
  %581 = vmatpush1.bf16.msra.mxu0 0
  %582 = vmatprep.subr.bf16.mxu0 0
  %583 = vmatpush1.bf16.msra.mxu0 0
  %584 = vmatprep.subr.bf16.mxu0 0
  %585 = vmatpush1.bf16.msra.mxu0 0
  %586 = vmatprep.subr.bf16.mxu0 0
  %587 = vmatpush1.bf16.msra.mxu0 0
  %588 = vmatprep.subr.bf16.mxu0 0
  %589 = vmatpush1.bf16.msra.mxu0 0
  %590 = vmatprep.mubr.bf16.mxu0 0
  %591 = vmatmul.mubr.bf16.gmra.mrb[0].mxu0 %v553
  %v592 = vpop.f32.mrb[0].mxu0
  %v593 = vadd.f32 %v547, %v592
  %v594 = vpop.f32.mrb[0].mxu0
  %v595 = vpop.f32.mrb[0].mxu0
  %v596 = vpop.f32.mrb[0].mxu0
  %597 = vdwg.mxu0
  %v598 = vpack.c.bf16 %v485, %v485
  %s599 = scalar_lea.vmem %s8, 8
  %v600 = vld [vmem:[%s599] sm:$0xf]
  %v602 = vsel %vm504, %v598, 0
  %v605 = vsel %vm508, %v600, 0
  %607 = vmatprep.subr.bf16.mxu0 0
  %608 = vmatpush1.bf16.msra.mxu0 %v605
  %609 = vmatprep.subr.bf16.mxu0 0
  %610 = vmatpush1.bf16.msra.mxu0 0
  %611 = vmatprep.subr.bf16.mxu0 0
  %612 = vmatpush1.bf16.msra.mxu0 0
  %613 = vmatprep.subr.bf16.mxu0 0
  %614 = vmatpush1.bf16.msra.mxu0 0
  %615 = vmatprep.subr.bf16.mxu0 0
  %616 = vmatpush1.bf16.msra.mxu0 0
  %617 = vmatprep.subr.bf16.mxu0 0
  %618 = vmatpush1.bf16.msra.mxu0 0
  %619 = vmatprep.subr.bf16.mxu0 0
  %620 = vmatpush1.bf16.msra.mxu0 0
  %621 = vmatprep.subr.bf16.mxu0 0
  %622 = vmatpush1.bf16.msra.mxu0 0
  %623 = vmatprep.subr.bf16.mxu0 0
  %624 = vmatpush1.bf16.msra.mxu0 0
  %625 = vmatprep.subr.bf16.mxu0 0
  %626 = vmatpush1.bf16.msra.mxu0 0
  %627 = vmatprep.subr.bf16.mxu0 0
  %628 = vmatpush1.bf16.msra.mxu0 0
  %629 = vmatprep.subr.bf16.mxu0 0
  %630 = vmatpush1.bf16.msra.mxu0 0
  %631 = vmatprep.subr.bf16.mxu0 0
  %632 = vmatpush1.bf16.msra.mxu0 0
  %633 = vmatprep.subr.bf16.mxu0 0
  %634 = vmatpush1.bf16.msra.mxu0 0
  %635 = vmatprep.subr.bf16.mxu0 0
  %636 = vmatpush1.bf16.msra.mxu0 0
  %637 = vmatprep.subr.bf16.mxu0 0
  %638 = vmatpush1.bf16.msra.mxu0 0
  %639 = vmatprep.mubr.bf16.mxu0 0
  %640 = vmatmul.mubr.bf16.gmra.mrb[0].mxu0 %v602
  %v641 = vpop.f32.mrb[0].mxu0
  %v642 = vadd.f32 0.0, %v641
  %v643 = vpop.f32.mrb[0].mxu0
  %v644 = vpop.f32.mrb[0].mxu0
  %v645 = vpop.f32.mrb[0].mxu0
  %646 = vdwg.mxu0
  %v647 = vadd.f32 %v593, %v642
  %v648 = vpack.c.bf16 %v486, %v486
  %s649 = scalar_lea.vmem %s8, 12
  %v650 = vld [vmem:[%s649] sm:$0xf]
  %v652 = vsel %vm504, %v648, 0
  %v655 = vsel %vm508, %v650, 0
  %657 = vmatprep.subr.bf16.mxu0 0
  %658 = vmatpush1.bf16.msra.mxu0 %v655
  %659 = vmatprep.subr.bf16.mxu0 0
  %660 = vmatpush1.bf16.msra.mxu0 0
  %661 = vmatprep.subr.bf16.mxu0 0
  %662 = vmatpush1.bf16.msra.mxu0 0
  %663 = vmatprep.subr.bf16.mxu0 0
  %664 = vmatpush1.bf16.msra.mxu0 0
  %665 = vmatprep.subr.bf16.mxu0 0
  %666 = vmatpush1.bf16.msra.mxu0 0
  %667 = vmatprep.subr.bf16.mxu0 0
  %668 = vmatpush1.bf16.msra.mxu0 0
  %669 = vmatprep.subr.bf16.mxu0 0
  %670 = vmatpush1.bf16.msra.mxu0 0
  %671 = vmatprep.subr.bf16.mxu0 0
  %672 = vmatpush1.bf16.msra.mxu0 0
  %673 = vmatprep.subr.bf16.mxu0 0
  %674 = vmatpush1.bf16.msra.mxu0 0
  %675 = vmatprep.subr.bf16.mxu0 0
  %676 = vmatpush1.bf16.msra.mxu0 0
  %677 = vmatprep.subr.bf16.mxu0 0
  %678 = vmatpush1.bf16.msra.mxu0 0
  %679 = vmatprep.subr.bf16.mxu0 0
  %680 = vmatpush1.bf16.msra.mxu0 0
  %681 = vmatprep.subr.bf16.mxu0 0
  %682 = vmatpush1.bf16.msra.mxu0 0
  %683 = vmatprep.subr.bf16.mxu0 0
  %684 = vmatpush1.bf16.msra.mxu0 0
  %685 = vmatprep.subr.bf16.mxu0 0
  %686 = vmatpush1.bf16.msra.mxu0 0
  %687 = vmatprep.subr.bf16.mxu0 0
  %688 = vmatpush1.bf16.msra.mxu0 0
  %689 = vmatprep.mubr.bf16.mxu0 0
  %690 = vmatmul.mubr.bf16.gmra.mrb[0].mxu0 %v652
  %v691 = vpop.f32.mrb[0].mxu0
  %v692 = vadd.f32 0.0, %v691
  %v693 = vpop.f32.mrb[0].mxu0
  %v694 = vpop.f32.mrb[0].mxu0
  %v695 = vpop.f32.mrb[0].mxu0
  %696 = vdwg.mxu0
  %v697 = vadd.f32 %v647, %v692
  %v698 = vpack.c.bf16 %v487, %v487
  %s699 = scalar_lea.vmem %s8, 16
  %v700 = vld [vmem:[%s699] sm:$0xf]
  %v702 = vsel %vm504, %v698, 0
  %v705 = vsel %vm508, %v700, 0
  %707 = vmatprep.subr.bf16.mxu0 0
  %708 = vmatpush1.bf16.msra.mxu0 %v705
  %709 = vmatprep.subr.bf16.mxu0 0
  %710 = vmatpush1.bf16.msra.mxu0 0
  %711 = vmatprep.subr.bf16.mxu0 0
  %712 = vmatpush1.bf16.msra.mxu0 0
  %713 = vmatprep.subr.bf16.mxu0 0
  %714 = vmatpush1.bf16.msra.mxu0 0
  %715 = vmatprep.subr.bf16.mxu0 0
  %716 = vmatpush1.bf16.msra.mxu0 0
  %717 = vmatprep.subr.bf16.mxu0 0
  %718 = vmatpush1.bf16.msra.mxu0 0
  %719 = vmatprep.subr.bf16.mxu0 0
  %720 = vmatpush1.bf16.msra.mxu0 0
  %721 = vmatprep.subr.bf16.mxu0 0
  %722 = vmatpush1.bf16.msra.mxu0 0
  %723 = vmatprep.subr.bf16.mxu0 0
  %724 = vmatpush1.bf16.msra.mxu0 0
  %725 = vmatprep.subr.bf16.mxu0 0
  %726 = vmatpush1.bf16.msra.mxu0 0
  %727 = vmatprep.subr.bf16.mxu0 0
  %728 = vmatpush1.bf16.msra.mxu0 0
  %729 = vmatprep.subr.bf16.mxu0 0
  %730 = vmatpush1.bf16.msra.mxu0 0
  %731 = vmatprep.subr.bf16.mxu0 0
  %732 = vmatpush1.bf16.msra.mxu0 0
  %733 = vmatprep.subr.bf16.mxu0 0
  %734 = vmatpush1.bf16.msra.mxu0 0
  %735 = vmatprep.subr.bf16.mxu0 0
  %736 = vmatpush1.bf16.msra.mxu0 0
  %737 = vmatprep.subr.bf16.mxu0 0
  %738 = vmatpush1.bf16.msra.mxu0 0
  %739 = vmatprep.mubr.bf16.mxu0 0
  %740 = vmatmul.mubr.bf16.gmra.mrb[0].mxu0 %v702
  %v741 = vpop.f32.mrb[0].mxu0
  %v742 = vadd.f32 0.0, %v741
  %v743 = vpop.f32.mrb[0].mxu0
  %v744 = vpop.f32.mrb[0].mxu0
  %v745 = vpop.f32.mrb[0].mxu0
  %746 = vdwg.mxu0
  %v747 = vadd.f32 %v697, %v742
  %v748 = vpack.c.bf16 %v488, %v488
  %s749 = scalar_lea.vmem %s8, 20
  %v750 = vld [vmem:[%s749] sm:$0xf]
  %v752 = vsel %vm504, %v748, 0
  %v755 = vsel %vm508, %v750, 0
  %757 = vmatprep.subr.bf16.mxu0 0
  %758 = vmatpush1.bf16.msra.mxu0 %v755
  %759 = vmatprep.subr.bf16.mxu0 0
  %760 = vmatpush1.bf16.msra.mxu0 0
  %761 = vmatprep.subr.bf16.mxu0 0
  %762 = vmatpush1.bf16.msra.mxu0 0
  %763 = vmatprep.subr.bf16.mxu0 0
  %764 = vmatpush1.bf16.msra.mxu0 0
  %765 = vmatprep.subr.bf16.mxu0 0
  %766 = vmatpush1.bf16.msra.mxu0 0
  %767 = vmatprep.subr.bf16.mxu0 0
  %768 = vmatpush1.bf16.msra.mxu0 0
  %769 = vmatprep.subr.bf16.mxu0 0
  %770 = vmatpush1.bf16.msra.mxu0 0
  %771 = vmatprep.subr.bf16.mxu0 0
  %772 = vmatpush1.bf16.msra.mxu0 0
  %773 = vmatprep.subr.bf16.mxu0 0
  %774 = vmatpush1.bf16.msra.mxu0 0
  %775 = vmatprep.subr.bf16.mxu0 0
  %776 = vmatpush1.bf16.msra.mxu0 0
  %777 = vmatprep.subr.bf16.mxu0 0
  %778 = vmatpush1.bf16.msra.mxu0 0
  %779 = vmatprep.subr.bf16.mxu0 0
  %780 = vmatpush1.bf16.msra.mxu0 0
  %781 = vmatprep.subr.bf16.mxu0 0
  %782 = vmatpush1.bf16.msra.mxu0 0
  %783 = vmatprep.subr.bf16.mxu0 0
  %784 = vmatpush1.bf16.msra.mxu0 0
  %785 = vmatprep.subr.bf16.mxu0 0
  %786 = vmatpush1.bf16.msra.mxu0 0
  %787 = vmatprep.subr.bf16.mxu0 0
  %788 = vmatpush1.bf16.msra.mxu0 0
  %789 = vmatprep.mubr.bf16.mxu0 0
  %790 = vmatmul.mubr.bf16.gmra.mrb[0].mxu0 %v752
  %v791 = vpop.f32.mrb[0].mxu0
  %v792 = vadd.f32 0.0, %v791
  %v793 = vpop.f32.mrb[0].mxu0
  %v794 = vpop.f32.mrb[0].mxu0
  %v795 = vpop.f32.mrb[0].mxu0
  %796 = vdwg.mxu0
  %v797 = vadd.f32 %v747, %v792
  %v798 = vpack.c.bf16 %v489, %v489
  %s799 = scalar_lea.vmem %s8, 24
  %v800 = vld [vmem:[%s799] sm:$0xf]
  %v802 = vsel %vm504, %v798, 0
  %v805 = vsel %vm508, %v800, 0
  %807 = vmatprep.subr.bf16.mxu0 0
  %808 = vmatpush1.bf16.msra.mxu0 %v805
  %809 = vmatprep.subr.bf16.mxu0 0
  %810 = vmatpush1.bf16.msra.mxu0 0
  %811 = vmatprep.subr.bf16.mxu0 0
  %812 = vmatpush1.bf16.msra.mxu0 0
  %813 = vmatprep.subr.bf16.mxu0 0
  %814 = vmatpush1.bf16.msra.mxu0 0
  %815 = vmatprep.subr.bf16.mxu0 0
  %816 = vmatpush1.bf16.msra.mxu0 0
  %817 = vmatprep.subr.bf16.mxu0 0
  %818 = vmatpush1.bf16.msra.mxu0 0
  %819 = vmatprep.subr.bf16.mxu0 0
  %820 = vmatpush1.bf16.msra.mxu0 0
  %821 = vmatprep.subr.bf16.mxu0 0
  %822 = vmatpush1.bf16.msra.mxu0 0
  %823 = vmatprep.subr.bf16.mxu0 0
  %824 = vmatpush1.bf16.msra.mxu0 0
  %825 = vmatprep.subr.bf16.mxu0 0
  %826 = vmatpush1.bf16.msra.mxu0 0
  %827 = vmatprep.subr.bf16.mxu0 0
  %828 = vmatpush1.bf16.msra.mxu0 0
  %829 = vmatprep.subr.bf16.mxu0 0
  %830 = vmatpush1.bf16.msra.mxu0 0
  %831 = vmatprep.subr.bf16.mxu0 0
  %832 = vmatpush1.bf16.msra.mxu0 0
  %833 = vmatprep.subr.bf16.mxu0 0
  %834 = vmatpush1.bf16.msra.mxu0 0
  %835 = vmatprep.subr.bf16.mxu0 0
  %836 = vmatpush1.bf16.msra.mxu0 0
  %837 = vmatprep.subr.bf16.mxu0 0
  %838 = vmatpush1.bf16.msra.mxu0 0
  %839 = vmatprep.mubr.bf16.mxu0 0
  %840 = vmatmul.mubr.bf16.gmra.mrb[0].mxu0 %v802
  %v841 = vpop.f32.mrb[0].mxu0
  %v842 = vadd.f32 0.0, %v841
  %v843 = vpop.f32.mrb[0].mxu0
  %v844 = vpop.f32.mrb[0].mxu0
  %v845 = vpop.f32.mrb[0].mxu0
  %846 = vdwg.mxu0
  %v847 = vadd.f32 %v797, %v842
  %v848 = vpack.c.bf16 %v490, %v490
  %s849 = scalar_lea.vmem %s8, 28
  %v850 = vld [vmem:[%s849] sm:$0xf]
  %v852 = vsel %vm504, %v848, 0
  %v855 = vsel %vm508, %v850, 0
  %857 = vmatprep.subr.bf16.mxu0 0
  %858 = vmatpush1.bf16.msra.mxu0 %v855
  %859 = vmatprep.subr.bf16.mxu0 0
  %860 = vmatpush1.bf16.msra.mxu0 0
  %861 = vmatprep.subr.bf16.mxu0 0
  %862 = vmatpush1.bf16.msra.mxu0 0
  %863 = vmatprep.subr.bf16.mxu0 0
  %864 = vmatpush1.bf16.msra.mxu0 0
  %865 = vmatprep.subr.bf16.mxu0 0
  %866 = vmatpush1.bf16.msra.mxu0 0
  %867 = vmatprep.subr.bf16.mxu0 0
  %868 = vmatpush1.bf16.msra.mxu0 0
  %869 = vmatprep.subr.bf16.mxu0 0
  %870 = vmatpush1.bf16.msra.mxu0 0
  %871 = vmatprep.subr.bf16.mxu0 0
  %872 = vmatpush1.bf16.msra.mxu0 0
  %873 = vmatprep.subr.bf16.mxu0 0
  %874 = vmatpush1.bf16.msra.mxu0 0
  %875 = vmatprep.subr.bf16.mxu0 0
  %876 = vmatpush1.bf16.msra.mxu0 0
  %877 = vmatprep.subr.bf16.mxu0 0
  %878 = vmatpush1.bf16.msra.mxu0 0
  %879 = vmatprep.subr.bf16.mxu0 0
  %880 = vmatpush1.bf16.msra.mxu0 0
  %881 = vmatprep.subr.bf16.mxu0 0
  %882 = vmatpush1.bf16.msra.mxu0 0
  %883 = vmatprep.subr.bf16.mxu0 0
  %884 = vmatpush1.bf16.msra.mxu0 0
  %885 = vmatprep.subr.bf16.mxu0 0
  %886 = vmatpush1.bf16.msra.mxu0 0
  %887 = vmatprep.subr.bf16.mxu0 0
  %888 = vmatpush1.bf16.msra.mxu0 0
  %889 = vmatprep.mubr.bf16.mxu0 0
  %890 = vmatmul.mubr.bf16.gmra.mrb[0].mxu0 %v852
  %v891 = vpop.f32.mrb[0].mxu0
  %v892 = vadd.f32 0.0, %v891
  %v893 = vpop.f32.mrb[0].mxu0
  %v894 = vpop.f32.mrb[0].mxu0
  %v895 = vpop.f32.mrb[0].mxu0
  %896 = vdwg.mxu0
  %v897 = vadd.f32 %v847, %v892
  %v898 = vpack.c.bf16 %v491, %v491
  %s899 = scalar_lea.vmem %s8, 32
  %v900 = vld [vmem:[%s899] sm:$0xf]
  %v902 = vsel %vm504, %v898, 0
  %v905 = vsel %vm508, %v900, 0
  %907 = vmatprep.subr.bf16.mxu0 0
  %908 = vmatpush1.bf16.msra.mxu0 %v905
  %909 = vmatprep.subr.bf16.mxu0 0
  %910 = vmatpush1.bf16.msra.mxu0 0
  %911 = vmatprep.subr.bf16.mxu0 0
  %912 = vmatpush1.bf16.msra.mxu0 0
  %913 = vmatprep.subr.bf16.mxu0 0
  %914 = vmatpush1.bf16.msra.mxu0 0
  %915 = vmatprep.subr.bf16.mxu0 0
  %916 = vmatpush1.bf16.msra.mxu0 0
  %917 = vmatprep.subr.bf16.mxu0 0
  %918 = vmatpush1.bf16.msra.mxu0 0
  %919 = vmatprep.subr.bf16.mxu0 0
  %920 = vmatpush1.bf16.msra.mxu0 0
  %921 = vmatprep.subr.bf16.mxu0 0
  %922 = vmatpush1.bf16.msra.mxu0 0
  %923 = vmatprep.subr.bf16.mxu0 0
  %924 = vmatpush1.bf16.msra.mxu0 0
  %925 = vmatprep.subr.bf16.mxu0 0
  %926 = vmatpush1.bf16.msra.mxu0 0
  %927 = vmatprep.subr.bf16.mxu0 0
  %928 = vmatpush1.bf16.msra.mxu0 0
  %929 = vmatprep.subr.bf16.mxu0 0
  %930 = vmatpush1.bf16.msra.mxu0 0
  %931 = vmatprep.subr.bf16.mxu0 0
  %932 = vmatpush1.bf16.msra.mxu0 0
  %933 = vmatprep.subr.bf16.mxu0 0
  %934 = vmatpush1.bf16.msra.mxu0 0
  %935 = vmatprep.subr.bf16.mxu0 0
  %936 = vmatpush1.bf16.msra.mxu0 0
  %937 = vmatprep.subr.bf16.mxu0 0
  %938 = vmatpush1.bf16.msra.mxu0 0
  %939 = vmatprep.mubr.bf16.mxu0 0
  %940 = vmatmul.mubr.bf16.gmra.mrb[0].mxu0 %v902
  %v941 = vpop.f32.mrb[0].mxu0
  %v942 = vadd.f32 0.0, %v941
  %v943 = vpop.f32.mrb[0].mxu0
  %v944 = vpop.f32.mrb[0].mxu0
  %v945 = vpop.f32.mrb[0].mxu0
  %946 = vdwg.mxu0
  %v947 = vadd.f32 %v897, %v942
  %v948 = vpack.c.bf16 %v492, %v492
  %s949 = scalar_lea.vmem %s8, 36
  %v950 = vld [vmem:[%s949] sm:$0xf]
  %v952 = vsel %vm504, %v948, 0
  %v955 = vsel %vm508, %v950, 0
  %957 = vmatprep.subr.bf16.mxu0 0
  %958 = vmatpush1.bf16.msra.mxu0 %v955
  %959 = vmatprep.subr.bf16.mxu0 0
  %960 = vmatpush1.bf16.msra.mxu0 0
  %961 = vmatprep.subr.bf16.mxu0 0
  %962 = vmatpush1.bf16.msra.mxu0 0
  %963 = vmatprep.subr.bf16.mxu0 0
  %964 = vmatpush1.bf16.msra.mxu0 0
  %965 = vmatprep.subr.bf16.mxu0 0
  %966 = vmatpush1.bf16.msra.mxu0 0
  %967 = vmatprep.subr.bf16.mxu0 0
  %968 = vmatpush1.bf16.msra.mxu0 0
  %969 = vmatprep.subr.bf16.mxu0 0
  %970 = vmatpush1.bf16.msra.mxu0 0
  %971 = vmatprep.subr.bf16.mxu0 0
  %972 = vmatpush1.bf16.msra.mxu0 0
  %973 = vmatprep.subr.bf16.mxu0 0
  %974 = vmatpush1.bf16.msra.mxu0 0
  %975 = vmatprep.subr.bf16.mxu0 0
  %976 = vmatpush1.bf16.msra.mxu0 0
  %977 = vmatprep.subr.bf16.mxu0 0
  %978 = vmatpush1.bf16.msra.mxu0 0
  %979 = vmatprep.subr.bf16.mxu0 0
  %980 = vmatpush1.bf16.msra.mxu0 0
  %981 = vmatprep.subr.bf16.mxu0 0
  %982 = vmatpush1.bf16.msra.mxu0 0
  %983 = vmatprep.subr.bf16.mxu0 0
  %984 = vmatpush1.bf16.msra.mxu0 0
  %985 = vmatprep.subr.bf16.mxu0 0
  %986 = vmatpush1.bf16.msra.mxu0 0
  %987 = vmatprep.subr.bf16.mxu0 0
  %988 = vmatpush1.bf16.msra.mxu0 0
  %989 = vmatprep.mubr.bf16.mxu0 0
  %990 = vmatmul.mubr.bf16.gmra.mrb[0].mxu0 %v952
  %v991 = vpop.f32.mrb[0].mxu0
  %v992 = vadd.f32 0.0, %v991
  %v993 = vpop.f32.mrb[0].mxu0
  %v994 = vpop.f32.mrb[0].mxu0
  %v995 = vpop.f32.mrb[0].mxu0
  %996 = vdwg.mxu0
  %v997 = vadd.f32 %v947, %v992
  %v998 = vpack.c.bf16 %v493, %v493
  %s999 = scalar_lea.vmem %s8, 40
  %v1000 = vld [vmem:[%s999] sm:$0xf]
  %v1002 = vsel %vm504, %v998, 0
  %v1005 = vsel %vm508, %v1000, 0
  %1007 = vmatprep.subr.bf16.mxu0 0
  %1008 = vmatpush1.bf16.msra.mxu0 %v1005
  %1009 = vmatprep.subr.bf16.mxu0 0
  %1010 = vmatpush1.bf16.msra.mxu0 0
  %1011 = vmatprep.subr.bf16.mxu0 0
  %1012 = vmatpush1.bf16.msra.mxu0 0
  %1013 = vmatprep.subr.bf16.mxu0 0
  %1014 = vmatpush1.bf16.msra.mxu0 0
  %1015 = vmatprep.subr.bf16.mxu0 0
  %1016 = vmatpush1.bf16.msra.mxu0 0
  %1017 = vmatprep.subr.bf16.mxu0 0
  %1018 = vmatpush1.bf16.msra.mxu0 0
  %1019 = vmatprep.subr.bf16.mxu0 0
  %1020 = vmatpush1.bf16.msra.mxu0 0
  %1021 = vmatprep.subr.bf16.mxu0 0
  %1022 = vmatpush1.bf16.msra.mxu0 0
  %1023 = vmatprep.subr.bf16.mxu0 0
  %1024 = vmatpush1.bf16.msra.mxu0 0
  %1025 = vmatprep.subr.bf16.mxu0 0
  %1026 = vmatpush1.bf16.msra.mxu0 0
  %1027 = vmatprep.subr.bf16.mxu0 0
  %1028 = vmatpush1.bf16.msra.mxu0 0
  %1029 = vmatprep.subr.bf16.mxu0 0
  %1030 = vmatpush1.bf16.msra.mxu0 0
  %1031 = vmatprep.subr.bf16.mxu0 0
  %1032 = vmatpush1.bf16.msra.mxu0 0
  %1033 = vmatprep.subr.bf16.mxu0 0
  %1034 = vmatpush1.bf16.msra.mxu0 0
  %1035 = vmatprep.subr.bf16.mxu0 0
  %1036 = vmatpush1.bf16.msra.mxu0 0
  %1037 = vmatprep.subr.bf16.mxu0 0
  %1038 = vmatpush1.bf16.msra.mxu0 0
  %1039 = vmatprep.mubr.bf16.mxu0 0
  %1040 = vmatmul.mubr.bf16.gmra.mrb[0].mxu0 %v1002
  %v1041 = vpop.f32.mrb[0].mxu0
  %v1042 = vadd.f32 0.0, %v1041
  %v1043 = vpop.f32.mrb[0].mxu0
  %v1044 = vpop.f32.mrb[0].mxu0
  %v1045 = vpop.f32.mrb[0].mxu0
  %1046 = vdwg.mxu0
  %v1047 = vadd.f32 %v997, %v1042
  %v1048 = vpack.c.bf16 %v494, %v494
  %s1049 = scalar_lea.vmem %s8, 44
  %v1050 = vld [vmem:[%s1049] sm:$0xf]
  %v1052 = vsel %vm504, %v1048, 0
  %v1055 = vsel %vm508, %v1050, 0
  %1057 = vmatprep.subr.bf16.mxu0 0
  %1058 = vmatpush1.bf16.msra.mxu0 %v1055
  %1059 = vmatprep.subr.bf16.mxu0 0
  %1060 = vmatpush1.bf16.msra.mxu0 0
  %1061 = vmatprep.subr.bf16.mxu0 0
  %1062 = vmatpush1.bf16.msra.mxu0 0
  %1063 = vmatprep.subr.bf16.mxu0 0
  %1064 = vmatpush1.bf16.msra.mxu0 0
  %1065 = vmatprep.subr.bf16.mxu0 0
  %1066 = vmatpush1.bf16.msra.mxu0 0
  %1067 = vmatprep.subr.bf16.mxu0 0
  %1068 = vmatpush1.bf16.msra.mxu0 0
  %1069 = vmatprep.subr.bf16.mxu0 0
  %1070 = vmatpush1.bf16.msra.mxu0 0
  %1071 = vmatprep.subr.bf16.mxu0 0
  %1072 = vmatpush1.bf16.msra.mxu0 0
  %1073 = vmatprep.subr.bf16.mxu0 0
  %1074 = vmatpush1.bf16.msra.mxu0 0
  %1075 = vmatprep.subr.bf16.mxu0 0
  %1076 = vmatpush1.bf16.msra.mxu0 0
  %1077 = vmatprep.subr.bf16.mxu0 0
  %1078 = vmatpush1.bf16.msra.mxu0 0
  %1079 = vmatprep.subr.bf16.mxu0 0
  %1080 = vmatpush1.bf16.msra.mxu0 0
  %1081 = vmatprep.subr.bf16.mxu0 0
  %1082 = vmatpush1.bf16.msra.mxu0 0
  %1083 = vmatprep.subr.bf16.mxu0 0
  %1084 = vmatpush1.bf16.msra.mxu0 0
  %1085 = vmatprep.subr.bf16.mxu0 0
  %1086 = vmatpush1.bf16.msra.mxu0 0
  %1087 = vmatprep.subr.bf16.mxu0 0
  %1088 = vmatpush1.bf16.msra.mxu0 0
  %1089 = vmatprep.mubr.bf16.mxu0 0
  %1090 = vmatmul.mubr.bf16.gmra.mrb[0].mxu0 %v1052
  %v1091 = vpop.f32.mrb[0].mxu0
  %v1092 = vadd.f32 0.0, %v1091
  %v1093 = vpop.f32.mrb[0].mxu0
  %v1094 = vpop.f32.mrb[0].mxu0
  %v1095 = vpop.f32.mrb[0].mxu0
  %1096 = vdwg.mxu0
  %v1097 = vadd.f32 %v1047, %v1092
  %v1098 = vpack.c.bf16 %v495, %v495
  %s1099 = scalar_lea.vmem %s8, 48
  %v1100 = vld [vmem:[%s1099] sm:$0xf]
  %v1102 = vsel %vm504, %v1098, 0
  %v1105 = vsel %vm508, %v1100, 0
  %1107 = vmatprep.subr.bf16.mxu0 0
  %1108 = vmatpush1.bf16.msra.mxu0 %v1105
  %1109 = vmatprep.subr.bf16.mxu0 0
  %1110 = vmatpush1.bf16.msra.mxu0 0
  %1111 = vmatprep.subr.bf16.mxu0 0
  %1112 = vmatpush1.bf16.msra.mxu0 0
  %1113 = vmatprep.subr.bf16.mxu0 0
  %1114 = vmatpush1.bf16.msra.mxu0 0
  %1115 = vmatprep.subr.bf16.mxu0 0
  %1116 = vmatpush1.bf16.msra.mxu0 0
  %1117 = vmatprep.subr.bf16.mxu0 0
  %1118 = vmatpush1.bf16.msra.mxu0 0
  %1119 = vmatprep.subr.bf16.mxu0 0
  %1120 = vmatpush1.bf16.msra.mxu0 0
  %1121 = vmatprep.subr.bf16.mxu0 0
  %1122 = vmatpush1.bf16.msra.mxu0 0
  %1123 = vmatprep.subr.bf16.mxu0 0
  %1124 = vmatpush1.bf16.msra.mxu0 0
  %1125 = vmatprep.subr.bf16.mxu0 0
  %1126 = vmatpush1.bf16.msra.mxu0 0
  %1127 = vmatprep.subr.bf16.mxu0 0
  %1128 = vmatpush1.bf16.msra.mxu0 0
  %1129 = vmatprep.subr.bf16.mxu0 0
  %1130 = vmatpush1.bf16.msra.mxu0 0
  %1131 = vmatprep.subr.bf16.mxu0 0
  %1132 = vmatpush1.bf16.msra.mxu0 0
  %1133 = vmatprep.subr.bf16.mxu0 0
  %1134 = vmatpush1.bf16.msra.mxu0 0
  %1135 = vmatprep.subr.bf16.mxu0 0
  %1136 = vmatpush1.bf16.msra.mxu0 0
  %1137 = vmatprep.subr.bf16.mxu0 0
  %1138 = vmatpush1.bf16.msra.mxu0 0
  %1139 = vmatprep.mubr.bf16.mxu0 0
  %1140 = vmatmul.mubr.bf16.gmra.mrb[0].mxu0 %v1102
  %v1141 = vpop.f32.mrb[0].mxu0
  %v1142 = vadd.f32 0.0, %v1141
  %v1143 = vpop.f32.mrb[0].mxu0
  %v1144 = vpop.f32.mrb[0].mxu0
  %v1145 = vpop.f32.mrb[0].mxu0
  %1146 = vdwg.mxu0
  %v1147 = vadd.f32 %v1097, %v1142
  %v1148 = vpack.c.bf16 %v496, %v496
  %s1149 = scalar_lea.vmem %s8, 52
  %v1150 = vld [vmem:[%s1149] sm:$0xf]
  %v1152 = vsel %vm504, %v1148, 0
  %v1155 = vsel %vm508, %v1150, 0
  %1157 = vmatprep.subr.bf16.mxu0 0
  %1158 = vmatpush1.bf16.msra.mxu0 %v1155
  %1159 = vmatprep.subr.bf16.mxu0 0
  %1160 = vmatpush1.bf16.msra.mxu0 0
  %1161 = vmatprep.subr.bf16.mxu0 0
  %1162 = vmatpush1.bf16.msra.mxu0 0
  %1163 = vmatprep.subr.bf16.mxu0 0
  %1164 = vmatpush1.bf16.msra.mxu0 0
  %1165 = vmatprep.subr.bf16.mxu0 0
  %1166 = vmatpush1.bf16.msra.mxu0 0
  %1167 = vmatprep.subr.bf16.mxu0 0
  %1168 = vmatpush1.bf16.msra.mxu0 0
  %1169 = vmatprep.subr.bf16.mxu0 0
  %1170 = vmatpush1.bf16.msra.mxu0 0
  %1171 = vmatprep.subr.bf16.mxu0 0
  %1172 = vmatpush1.bf16.msra.mxu0 0
  %1173 = vmatprep.subr.bf16.mxu0 0
  %1174 = vmatpush1.bf16.msra.mxu0 0
  %1175 = vmatprep.subr.bf16.mxu0 0
  %1176 = vmatpush1.bf16.msra.mxu0 0
  %1177 = vmatprep.subr.bf16.mxu0 0
  %1178 = vmatpush1.bf16.msra.mxu0 0
  %1179 = vmatprep.subr.bf16.mxu0 0
  %1180 = vmatpush1.bf16.msra.mxu0 0
  %1181 = vmatprep.subr.bf16.mxu0 0
  %1182 = vmatpush1.bf16.msra.mxu0 0
  %1183 = vmatprep.subr.bf16.mxu0 0
  %1184 = vmatpush1.bf16.msra.mxu0 0
  %1185 = vmatprep.subr.bf16.mxu0 0
  %1186 = vmatpush1.bf16.msra.mxu0 0
  %1187 = vmatprep.subr.bf16.mxu0 0
  %1188 = vmatpush1.bf16.msra.mxu0 0
  %1189 = vmatprep.mubr.bf16.mxu0 0
  %1190 = vmatmul.mubr.bf16.gmra.mrb[0].mxu0 %v1152
  %v1191 = vpop.f32.mrb[0].mxu0
  %v1192 = vadd.f32 0.0, %v1191
  %v1193 = vpop.f32.mrb[0].mxu0
  %v1194 = vpop.f32.mrb[0].mxu0
  %v1195 = vpop.f32.mrb[0].mxu0
  %1196 = vdwg.mxu0
  %v1197 = vadd.f32 %v1147, %v1192
  %v1198 = vpack.c.bf16 %v497, %v497
  %s1199 = scalar_lea.vmem %s8, 56
  %v1200 = vld [vmem:[%s1199] sm:$0xf]
  %v1202 = vsel %vm504, %v1198, 0
  %v1205 = vsel %vm508, %v1200, 0
  %1207 = vmatprep.subr.bf16.mxu0 0
  %1208 = vmatpush1.bf16.msra.mxu0 %v1205
  %1209 = vmatprep.subr.bf16.mxu0 0
  %1210 = vmatpush1.bf16.msra.mxu0 0
  %1211 = vmatprep.subr.bf16.mxu0 0
  %1212 = vmatpush1.bf16.msra.mxu0 0
  %1213 = vmatprep.subr.bf16.mxu0 0
  %1214 = vmatpush1.bf16.msra.mxu0 0
  %1215 = vmatprep.subr.bf16.mxu0 0
  %1216 = vmatpush1.bf16.msra.mxu0 0
  %1217 = vmatprep.subr.bf16.mxu0 0
  %1218 = vmatpush1.bf16.msra.mxu0 0
  %1219 = vmatprep.subr.bf16.mxu0 0
  %1220 = vmatpush1.bf16.msra.mxu0 0
  %1221 = vmatprep.subr.bf16.mxu0 0
  %1222 = vmatpush1.bf16.msra.mxu0 0
  %1223 = vmatprep.subr.bf16.mxu0 0
  %1224 = vmatpush1.bf16.msra.mxu0 0
  %1225 = vmatprep.subr.bf16.mxu0 0
  %1226 = vmatpush1.bf16.msra.mxu0 0
  %1227 = vmatprep.subr.bf16.mxu0 0
  %1228 = vmatpush1.bf16.msra.mxu0 0
  %1229 = vmatprep.subr.bf16.mxu0 0
  %1230 = vmatpush1.bf16.msra.mxu0 0
  %1231 = vmatprep.subr.bf16.mxu0 0
  %1232 = vmatpush1.bf16.msra.mxu0 0
  %1233 = vmatprep.subr.bf16.mxu0 0
  %1234 = vmatpush1.bf16.msra.mxu0 0
  %1235 = vmatprep.subr.bf16.mxu0 0
  %1236 = vmatpush1.bf16.msra.mxu0 0
  %1237 = vmatprep.subr.bf16.mxu0 0
  %1238 = vmatpush1.bf16.msra.mxu0 0
  %1239 = vmatprep.mubr.bf16.mxu0 0
  %1240 = vmatmul.mubr.bf16.gmra.mrb[0].mxu0 %v1202
  %v1241 = vpop.f32.mrb[0].mxu0
  %v1242 = vadd.f32 0.0, %v1241
  %v1243 = vpop.f32.mrb[0].mxu0
  %v1244 = vpop.f32.mrb[0].mxu0
  %v1245 = vpop.f32.mrb[0].mxu0
  %1246 = vdwg.mxu0
  %v1247 = vadd.f32 %v1197, %v1242
  %v1248 = vpack.c.bf16 %v498, %v498
  %s1249 = scalar_lea.vmem %s8, 60
  %v1250 = vld [vmem:[%s1249] sm:$0xf]
  %v1252 = vsel %vm504, %v1248, 0
  %v1255 = vsel %vm508, %v1250, 0
  %1257 = vmatprep.subr.bf16.mxu0 0
  %1258 = vmatpush1.bf16.msra.mxu0 %v1255
  %1259 = vmatprep.subr.bf16.mxu0 0
  %1260 = vmatpush1.bf16.msra.mxu0 0
  %1261 = vmatprep.subr.bf16.mxu0 0
  %1262 = vmatpush1.bf16.msra.mxu0 0
  %1263 = vmatprep.subr.bf16.mxu0 0
  %1264 = vmatpush1.bf16.msra.mxu0 0
  %1265 = vmatprep.subr.bf16.mxu0 0
  %1266 = vmatpush1.bf16.msra.mxu0 0
  %1267 = vmatprep.subr.bf16.mxu0 0
  %1268 = vmatpush1.bf16.msra.mxu0 0
  %1269 = vmatprep.subr.bf16.mxu0 0
  %1270 = vmatpush1.bf16.msra.mxu0 0
  %1271 = vmatprep.subr.bf16.mxu0 0
  %1272 = vmatpush1.bf16.msra.mxu0 0
  %1273 = vmatprep.subr.bf16.mxu0 0
  %1274 = vmatpush1.bf16.msra.mxu0 0
  %1275 = vmatprep.subr.bf16.mxu0 0
  %1276 = vmatpush1.bf16.msra.mxu0 0
  %1277 = vmatprep.subr.bf16.mxu0 0
  %1278 = vmatpush1.bf16.msra.mxu0 0
  %1279 = vmatprep.subr.bf16.mxu0 0
  %1280 = vmatpush1.bf16.msra.mxu0 0
  %1281 = vmatprep.subr.bf16.mxu0 0
  %1282 = vmatpush1.bf16.msra.mxu0 0
  %1283 = vmatprep.subr.bf16.mxu0 0
  %1284 = vmatpush1.bf16.msra.mxu0 0
  %1285 = vmatprep.subr.bf16.mxu0 0
  %1286 = vmatpush1.bf16.msra.mxu0 0
  %1287 = vmatprep.subr.bf16.mxu0 0
  %1288 = vmatpush1.bf16.msra.mxu0 0
  %1289 = vmatprep.mubr.bf16.mxu0 0
  %1290 = vmatmul.mubr.bf16.gmra.mrb[0].mxu0 %v1252
  %v1291 = vpop.f32.mrb[0].mxu0
  %v1292 = vadd.f32 0.0, %v1291
  %v1293 = vpop.f32.mrb[0].mxu0
  %v1294 = vpop.f32.mrb[0].mxu0
  %v1295 = vpop.f32.mrb[0].mxu0
  %1296 = vdwg.mxu0
  %v1297 = vadd.f32 %v1247, %v1292
  %v1298 = vld [vmem:[%s1] sm:$0xff]
  %v1299 = vld [vmem:[#allocation2] sm:$0xff]
  %v1300 = vld [vmem:[%s7] sm:$0xf]
  %v1301 = vld [vmem:[%s7 + $0x4] sm:$0xf]
  %v1302 = vld [vmem:[%s7 + $0x8] sm:$0xf]
  %v1303 = vld [vmem:[%s7 + $0xc] sm:$0xf]
  %v1308 = vunpack.c.l.b16 %v1300
  %v1309 = vunpack.c.l.b16 %v1301
  %v1310 = vunpack.c.l.b16 %v1302
  %v1311 = vunpack.c.l.b16 %v1303
  %v1312 = vpack.c.b16 %v1309, %v1308
  %v1313 = vpack.c.b16 %v1311, %v1310
  %vm1316 = vcmask 261120
  %v1318 = vsel %vm1316, 0, 0
  %1320 = vmatprep.subr.bf16.mxu0 0
  %1321 = vmatpush1.bf16.msra.mxu0 %v1312
  %1322 = vmatprep.subr.bf16.mxu0 0
  %1323 = vmatpush1.bf16.msra.mxu0 %v1313
  %1324 = vmatprep.subr.bf16.mxu0 0
  %1325 = vmatpush1.bf16.msra.mxu0 0
  %1326 = vmatprep.subr.bf16.mxu0 0
  %1327 = vmatpush1.bf16.msra.mxu0 0
  %1328 = vmatprep.subr.bf16.mxu0 0
  %1329 = vmatpush1.bf16.msra.mxu0 0
  %1330 = vmatprep.subr.bf16.mxu0 0
  %1331 = vmatpush1.bf16.msra.mxu0 0
  %1332 = vmatprep.subr.bf16.mxu0 0
  %1333 = vmatpush1.bf16.msra.mxu0 0
  %1334 = vmatprep.subr.bf16.mxu0 0
  %1335 = vmatpush1.bf16.msra.mxu0 0
  %1336 = vmatprep.subr.bf16.mxu0 0
  %1337 = vmatpush1.bf16.msra.mxu0 0
  %1338 = vmatprep.subr.bf16.mxu0 0
  %1339 = vmatpush1.bf16.msra.mxu0 0
  %1340 = vmatprep.subr.bf16.mxu0 0
  %1341 = vmatpush1.bf16.msra.mxu0 0
  %1342 = vmatprep.subr.bf16.mxu0 0
  %1343 = vmatpush1.bf16.msra.mxu0 0
  %1344 = vmatprep.subr.bf16.mxu0 0
  %1345 = vmatpush1.bf16.msra.mxu0 0
  %1346 = vmatprep.subr.bf16.mxu0 0
  %1347 = vmatpush1.bf16.msra.mxu0 0
  %1348 = vmatprep.subr.bf16.mxu0 0
  %1349 = vmatpush1.bf16.msra.mxu0 0
  %1350 = vmatprep.subr.bf16.mxu0 0
  %1351 = vmatpush1.bf16.msra.mxu0 0
  %1352 = vmatprep.mubr.bf16.mxu0 0
  %1353 = vmatmul.mubr.bf16.gmra.mrb[0].mxu0 %v1318
  %v1354 = vpop.f32.mrb[0].mxu0
  %v1355 = vadd.f32 0.0, %v1354
  %v1356 = vpop.f32.mrb[0].mxu0
  %v1357 = vpop.f32.mrb[0].mxu0
  %v1358 = vpop.f32.mrb[0].mxu0
  %1359 = vdwg.mxu0
  %v1360 = vadd.f32 %v1299, %v1355
  %v1361 = vxor.u32 %v1360, 2147483648
  %v1362 = vmul.f32 %v1361, 1.442695
  %v1363 = vpow.pop %v1362
  %v1364 = vadd.f32 %v1363, 1.0
  %v1365 = vrcp.pop %v1364
  %v1366 = vmul.f32 1.0, %v1365
  %v1367 = vtanh.pop %v1360
  %v1368 = vmul.f32 %v1366, 0.0
  %1370 = vrot.lane.b32.xlu0 %v1367, 64
  %v1371 = vpop.permute.xlu0 %1370
  %v1373 = vmul.f32 %v1366, %v1371
  %1375 = vrot.lane.b32.xlu0 %v1373, 32
  %v1376 = vpop.permute.xlu0 %1375
  %v1378 = vadd.f32 %v1368, %v1376
  %v1379 = vtanh.pop %v1378
  %1381 = vrot.lane.b32.xlu0 %v1379, 64
  %v1382 = vpop.permute.xlu0 %1381
  %v1384 = vmul.f32 %v1366, %v1382
  %vm1385 = vcmp.eq.s32.totalorder %v1298, 1
  %v1386 = vsel %vm1385, 1, 0
  %1387 = vset.pattern.permute.xlu0 0
  %1388 = vperm.xlu0 %1387, %v1386
  %v1389 = vpop.permute.xlu0 %1388
  %vm1390 = vcmp.eq.s32.totalorder %v1389, 1
  %v1391 = vsel %vm1390, %v1384, 0.0
  %v1392 = vld [vmem:[#allocation2 + $0x8] sm:$0xff]
  %v1393 = vpack.c.bf16 %v1384, %v1384
  %1395 = vrot.lane.b32.xlu0 %v1393, 32
  %v1396 = vpop.permute.xlu0 %1395
  %v1398 = vsel %vm1316, %v1396, 0
  %1400 = vmatprep.subr.bf16.mxu0 0
  %1401 = vmatpush1.bf16.msra.mxu0 %v1312
  %1402 = vmatprep.subr.bf16.mxu0 0
  %1403 = vmatpush1.bf16.msra.mxu0 %v1313
  %1404 = vmatprep.subr.bf16.mxu0 0
  %1405 = vmatpush1.bf16.msra.mxu0 0
  %1406 = vmatprep.subr.bf16.mxu0 0
  %1407 = vmatpush1.bf16.msra.mxu0 0
  %1408 = vmatprep.subr.bf16.mxu0 0
  %1409 = vmatpush1.bf16.msra.mxu0 0
  %1410 = vmatprep.subr.bf16.mxu0 0
  %1411 = vmatpush1.bf16.msra.mxu0 0
  %1412 = vmatprep.subr.bf16.mxu0 0
  %1413 = vmatpush1.bf16.msra.mxu0 0
  %1414 = vmatprep.subr.bf16.mxu0 0
  %1415 = vmatpush1.bf16.msra.mxu0 0
  %1416 = vmatprep.subr.bf16.mxu0 0
  %1417 = vmatpush1.bf16.msra.mxu0 0
  %1418 = vmatprep.subr.bf16.mxu0 0
  %1419 = vmatpush1.bf16.msra.mxu0 0
  %1420 = vmatprep.subr.bf16.mxu0 0
  %1421 = vmatpush1.bf16.msra.mxu0 0
  %1422 = vmatprep.subr.bf16.mxu0 0
  %1423 = vmatpush1.bf16.msra.mxu0 0
  %1424 = vmatprep.subr.bf16.mxu0 0
  %1425 = vmatpush1.bf16.msra.mxu0 0
  %1426 = vmatprep.subr.bf16.mxu0 0
  %1427 = vmatpush1.bf16.msra.mxu0 0
  %1428 = vmatprep.subr.bf16.mxu0 0
  %1429 = vmatpush1.bf16.msra.mxu0 0
  %1430 = vmatprep.subr.bf16.mxu0 0
  %1431 = vmatpush1.bf16.msra.mxu0 0
  %1432 = vmatprep.mubr.bf16.mxu0 0
  %1433 = vmatmul.mubr.bf16.gmra.mrb[0].mxu0 %v1398
  %v1434 = vpop.f32.mrb[0].mxu0
  %v1435 = vadd.f32 0.0, %v1434
  %v1436 = vpop.f32.mrb[0].mxu0
  %v1437 = vpop.f32.mrb[0].mxu0
  %v1438 = vpop.f32.mrb[0].mxu0
  %1439 = vdwg.mxu0
  %v1440 = vadd.f32 %v1392, %v1435
  %v1441 = vxor.u32 %v1440, 2147483648
  %v1442 = vmul.f32 %v1441, 1.442695
  %v1443 = vpow.pop %v1442
  %v1444 = vadd.f32 %v1443, 1.0
  %v1445 = vrcp.pop %v1444
  %v1446 = vmul.f32 1.0, %v1445
  %v1447 = vtanh.pop %v1440
  %v1448 = vmul.f32 %v1446, %v1378
  %1450 = vrot.lane.b32.xlu0 %v1447, 64
  %v1451 = vpop.permute.xlu0 %1450
  %v1453 = vmul.f32 %v1446, %v1451
  %1455 = vrot.lane.b32.xlu0 %v1453, 32
  %v1456 = vpop.permute.xlu0 %1455
  %v1458 = vadd.f32 %v1448, %v1456
  %v1459 = vtanh.pop %v1458
  %1461 = vrot.lane.b32.xlu0 %v1459, 64
  %v1462 = vpop.permute.xlu0 %1461
  %v1464 = vmul.f32 %v1446, %v1462
  %vm1465 = vcmp.eq.s32.totalorder %v1298, 2
  %v1466 = vsel %vm1465, 1, 0
  %1467 = vset.pattern.permute.xlu0 0
  %1468 = vperm.xlu0 %1467, %v1466
  %v1469 = vpop.permute.xlu0 %1468
  %vm1470 = vcmp.eq.s32.totalorder %v1469, 1
  %v1471 = vsel %vm1470, %v1464, %v1391
  %v1472 = vld [vmem:[#allocation2 + $0x10] sm:$0xff]
  %v1473 = vpack.c.bf16 %v1464, %v1464
  %1475 = vrot.lane.b32.xlu0 %v1473, 32
  %v1476 = vpop.permute.xlu0 %1475
  %v1478 = vsel %vm1316, %v1476, 0
  %1480 = vmatprep.subr.bf16.mxu0 0
  %1481 = vmatpush1.bf16.msra.mxu0 %v1312
  %1482 = vmatprep.subr.bf16.mxu0 0
  %1483 = vmatpush1.bf16.msra.mxu0 %v1313
  %1484 = vmatprep.subr.bf16.mxu0 0
  %1485 = vmatpush1.bf16.msra.mxu0 0
  %1486 = vmatprep.subr.bf16.mxu0 0
  %1487 = vmatpush1.bf16.msra.mxu0 0
  %1488 = vmatprep.subr.bf16.mxu0 0
  %1489 = vmatpush1.bf16.msra.mxu0 0
  %1490 = vmatprep.subr.bf16.mxu0 0
  %1491 = vmatpush1.bf16.msra.mxu0 0
  %1492 = vmatprep.subr.bf16.mxu0 0
  %1493 = vmatpush1.bf16.msra.mxu0 0
  %1494 = vmatprep.subr.bf16.mxu0 0
  %1495 = vmatpush1.bf16.msra.mxu0 0
  %1496 = vmatprep.subr.bf16.mxu0 0
  %1497 = vmatpush1.bf16.msra.mxu0 0
  %1498 = vmatprep.subr.bf16.mxu0 0
  %1499 = vmatpush1.bf16.msra.mxu0 0
  %1500 = vmatprep.subr.bf16.mxu0 0
  %1501 = vmatpush1.bf16.msra.mxu0 0
  %1502 = vmatprep.subr.bf16.mxu0 0
  %1503 = vmatpush1.bf16.msra.mxu0 0
  %1504 = vmatprep.subr.bf16.mxu0 0
  %1505 = vmatpush1.bf16.msra.mxu0 0
  %1506 = vmatprep.subr.bf16.mxu0 0
  %1507 = vmatpush1.bf16.msra.mxu0 0
  %1508 = vmatprep.subr.bf16.mxu0 0
  %1509 = vmatpush1.bf16.msra.mxu0 0
  %1510 = vmatprep.subr.bf16.mxu0 0
  %1511 = vmatpush1.bf16.msra.mxu0 0
  %1512 = vmatprep.mubr.bf16.mxu0 0
  %1513 = vmatmul.mubr.bf16.gmra.mrb[0].mxu0 %v1478
  %v1514 = vpop.f32.mrb[0].mxu0
  %v1515 = vadd.f32 0.0, %v1514
  %v1516 = vpop.f32.mrb[0].mxu0
  %v1517 = vpop.f32.mrb[0].mxu0
  %v1518 = vpop.f32.mrb[0].mxu0
  %1519 = vdwg.mxu0
  %v1520 = vadd.f32 %v1472, %v1515
  %v1521 = vxor.u32 %v1520, 2147483648
  %v1522 = vmul.f32 %v1521, 1.442695
  %v1523 = vpow.pop %v1522
  %v1524 = vadd.f32 %v1523, 1.0
  %v1525 = vrcp.pop %v1524
  %v1526 = vmul.f32 1.0, %v1525
  %v1527 = vtanh.pop %v1520
  %v1528 = vmul.f32 %v1526, %v1458
  %1530 = vrot.lane.b32.xlu0 %v1527, 64
  %v1531 = vpop.permute.xlu0 %1530
  %v1533 = vmul.f32 %v1526, %v1531
  %1535 = vrot.lane.b32.xlu0 %v1533, 32
  %v1536 = vpop.permute.xlu0 %1535
  %v1538 = vadd.f32 %v1528, %v1536
  %v1539 = vtanh.pop %v1538
  %1541 = vrot.lane.b32.xlu0 %v1539, 64
  %v1542 = vpop.permute.xlu0 %1541
  %v1544 = vmul.f32 %v1526, %v1542
  %vm1545 = vcmp.eq.s32.totalorder %v1298, 3
  %v1546 = vsel %vm1545, 1, 0
  %1547 = vset.pattern.permute.xlu0 0
  %1548 = vperm.xlu0 %1547, %v1546
  %v1549 = vpop.permute.xlu0 %1548
  %vm1550 = vcmp.eq.s32.totalorder %v1549, 1
  %v1551 = vsel %vm1550, %v1544, %v1471
  %v1552 = vld [vmem:[#allocation2 + $0x18] sm:$0xff]
  %v1553 = vpack.c.bf16 %v1544, %v1544
  %1555 = vrot.lane.b32.xlu0 %v1553, 32
  %v1556 = vpop.permute.xlu0 %1555
  %v1558 = vsel %vm1316, %v1556, 0
  %1560 = vmatprep.subr.bf16.mxu0 0
  %1561 = vmatpush1.bf16.msra.mxu0 %v1312
  %1562 = vmatprep.subr.bf16.mxu0 0
  %1563 = vmatpush1.bf16.msra.mxu0 %v1313
  %1564 = vmatprep.subr.bf16.mxu0 0
  %1565 = vmatpush1.bf16.msra.mxu0 0
  %1566 = vmatprep.subr.bf16.mxu0 0
  %1567 = vmatpush1.bf16.msra.mxu0 0
  %1568 = vmatprep.subr.bf16.mxu0 0
  %1569 = vmatpush1.bf16.msra.mxu0 0
  %1570 = vmatprep.subr.bf16.mxu0 0
  %1571 = vmatpush1.bf16.msra.mxu0 0
  %1572 = vmatprep.subr.bf16.mxu0 0
  %1573 = vmatpush1.bf16.msra.mxu0 0
  %1574 = vmatprep.subr.bf16.mxu0 0
  %1575 = vmatpush1.bf16.msra.mxu0 0
  %1576 = vmatprep.subr.bf16.mxu0 0
  %1577 = vmatpush1.bf16.msra.mxu0 0
  %1578 = vmatprep.subr.bf16.mxu0 0
  %1579 = vmatpush1.bf16.msra.mxu0 0
  %1580 = vmatprep.subr.bf16.mxu0 0
  %1581 = vmatpush1.bf16.msra.mxu0 0
  %1582 = vmatprep.subr.bf16.mxu0 0
  %1583 = vmatpush1.bf16.msra.mxu0 0
  %1584 = vmatprep.subr.bf16.mxu0 0
  %1585 = vmatpush1.bf16.msra.mxu0 0
  %1586 = vmatprep.subr.bf16.mxu0 0
  %1587 = vmatpush1.bf16.msra.mxu0 0
  %1588 = vmatprep.subr.bf16.mxu0 0
  %1589 = vmatpush1.bf16.msra.mxu0 0
  %1590 = vmatprep.subr.bf16.mxu0 0
  %1591 = vmatpush1.bf16.msra.mxu0 0
  %1592 = vmatprep.mubr.bf16.mxu0 0
  %1593 = vmatmul.mubr.bf16.gmra.mrb[0].mxu0 %v1558
  %v1594 = vpop.f32.mrb[0].mxu0
  %v1595 = vadd.f32 0.0, %v1594
  %v1596 = vpop.f32.mrb[0].mxu0
  %v1597 = vpop.f32.mrb[0].mxu0
  %v1598 = vpop.f32.mrb[0].mxu0
  %1599 = vdwg.mxu0
  %v1600 = vadd.f32 %v1552, %v1595
  %v1601 = vxor.u32 %v1600, 2147483648
  %v1602 = vmul.f32 %v1601, 1.442695
  %v1603 = vpow.pop %v1602
  %v1604 = vadd.f32 %v1603, 1.0
  %v1605 = vrcp.pop %v1604
  %v1606 = vmul.f32 1.0, %v1605
  %v1607 = vtanh.pop %v1600
  %v1608 = vmul.f32 %v1606, %v1538
  %1610 = vrot.lane.b32.xlu0 %v1607, 64
  %v1611 = vpop.permute.xlu0 %1610
  %v1613 = vmul.f32 %v1606, %v1611
  %1615 = vrot.lane.b32.xlu0 %v1613, 32
  %v1616 = vpop.permute.xlu0 %1615
  %v1618 = vadd.f32 %v1608, %v1616
  %v1619 = vtanh.pop %v1618
  %1621 = vrot.lane.b32.xlu0 %v1619, 64
  %v1622 = vpop.permute.xlu0 %1621
  %v1624 = vmul.f32 %v1606, %v1622
  %vm1625 = vcmp.eq.s32.totalorder %v1298, 4
  %v1626 = vsel %vm1625, 1, 0
  %1627 = vset.pattern.permute.xlu0 0
  %1628 = vperm.xlu0 %1627, %v1626
  %v1629 = vpop.permute.xlu0 %1628
  %vm1630 = vcmp.eq.s32.totalorder %v1629, 1
  %v1631 = vsel %vm1630, %v1624, %v1551
  %v1632 = vld [vmem:[#allocation2 + $0x20] sm:$0xff]
  %v1633 = vpack.c.bf16 %v1624, %v1624
  %1635 = vrot.lane.b32.xlu0 %v1633, 32
  %v1636 = vpop.permute.xlu0 %1635
  %v1638 = vsel %vm1316, %v1636, 0
  %1640 = vmatprep.subr.bf16.mxu0 0
  %1641 = vmatpush1.bf16.msra.mxu0 %v1312
  %1642 = vmatprep.subr.bf16.mxu0 0
  %1643 = vmatpush1.bf16.msra.mxu0 %v1313
  %1644 = vmatprep.subr.bf16.mxu0 0
  %1645 = vmatpush1.bf16.msra.mxu0 0
  %1646 = vmatprep.subr.bf16.mxu0 0
  %1647 = vmatpush1.bf16.msra.mxu0 0
  %1648 = vmatprep.subr.bf16.mxu0 0
  %1649 = vmatpush1.bf16.msra.mxu0 0
  %1650 = vmatprep.subr.bf16.mxu0 0
  %1651 = vmatpush1.bf16.msra.mxu0 0
  %1652 = vmatprep.subr.bf16.mxu0 0
  %1653 = vmatpush1.bf16.msra.mxu0 0
  %1654 = vmatprep.subr.bf16.mxu0 0
  %1655 = vmatpush1.bf16.msra.mxu0 0
  %1656 = vmatprep.subr.bf16.mxu0 0
  %1657 = vmatpush1.bf16.msra.mxu0 0
  %1658 = vmatprep.subr.bf16.mxu0 0
  %1659 = vmatpush1.bf16.msra.mxu0 0
  %1660 = vmatprep.subr.bf16.mxu0 0
  %1661 = vmatpush1.bf16.msra.mxu0 0
  %1662 = vmatprep.subr.bf16.mxu0 0
  %1663 = vmatpush1.bf16.msra.mxu0 0
  %1664 = vmatprep.subr.bf16.mxu0 0
  %1665 = vmatpush1.bf16.msra.mxu0 0
  %1666 = vmatprep.subr.bf16.mxu0 0
  %1667 = vmatpush1.bf16.msra.mxu0 0
  %1668 = vmatprep.subr.bf16.mxu0 0
  %1669 = vmatpush1.bf16.msra.mxu0 0
  %1670 = vmatprep.subr.bf16.mxu0 0
  %1671 = vmatpush1.bf16.msra.mxu0 0
  %1672 = vmatprep.mubr.bf16.mxu0 0
  %1673 = vmatmul.mubr.bf16.gmra.mrb[0].mxu0 %v1638
  %v1674 = vpop.f32.mrb[0].mxu0
  %v1675 = vadd.f32 0.0, %v1674
  %v1676 = vpop.f32.mrb[0].mxu0
  %v1677 = vpop.f32.mrb[0].mxu0
  %v1678 = vpop.f32.mrb[0].mxu0
  %1679 = vdwg.mxu0
  %v1680 = vadd.f32 %v1632, %v1675
  %v1681 = vxor.u32 %v1680, 2147483648
  %v1682 = vmul.f32 %v1681, 1.442695
  %v1683 = vpow.pop %v1682
  %v1684 = vadd.f32 %v1683, 1.0
  %v1685 = vrcp.pop %v1684
  %v1686 = vmul.f32 1.0, %v1685
  %v1687 = vtanh.pop %v1680
  %v1688 = vmul.f32 %v1686, %v1618
  %1690 = vrot.lane.b32.xlu0 %v1687, 64
  %v1691 = vpop.permute.xlu0 %1690
  %v1693 = vmul.f32 %v1686, %v1691
  %1695 = vrot.lane.b32.xlu0 %v1693, 32
  %v1696 = vpop.permute.xlu0 %1695
  %v1698 = vadd.f32 %v1688, %v1696
  %v1699 = vtanh.pop %v1698
  %1701 = vrot.lane.b32.xlu0 %v1699, 64
  %v1702 = vpop.permute.xlu0 %1701
  %v1704 = vmul.f32 %v1686, %v1702
  %vm1705 = vcmp.eq.s32.totalorder %v1298, 5
  %v1706 = vsel %vm1705, 1, 0
  %1707 = vset.pattern.permute.xlu0 0
  %1708 = vperm.xlu0 %1707, %v1706
  %v1709 = vpop.permute.xlu0 %1708
  %vm1710 = vcmp.eq.s32.totalorder %v1709, 1
  %v1711 = vsel %vm1710, %v1704, %v1631
  %v1712 = vld [vmem:[#allocation2 + $0x28] sm:$0xff]
  %v1713 = vpack.c.bf16 %v1704, %v1704
  %1715 = vrot.lane.b32.xlu0 %v1713, 32
  %v1716 = vpop.permute.xlu0 %1715
  %v1718 = vsel %vm1316, %v1716, 0
  %1720 = vmatprep.subr.bf16.mxu0 0
  %1721 = vmatpush1.bf16.msra.mxu0 %v1312
  %1722 = vmatprep.subr.bf16.mxu0 0
  %1723 = vmatpush1.bf16.msra.mxu0 %v1313
  %1724 = vmatprep.subr.bf16.mxu0 0
  %1725 = vmatpush1.bf16.msra.mxu0 0
  %1726 = vmatprep.subr.bf16.mxu0 0
  %1727 = vmatpush1.bf16.msra.mxu0 0
  %1728 = vmatprep.subr.bf16.mxu0 0
  %1729 = vmatpush1.bf16.msra.mxu0 0
  %1730 = vmatprep.subr.bf16.mxu0 0
  %1731 = vmatpush1.bf16.msra.mxu0 0
  %1732 = vmatprep.subr.bf16.mxu0 0
  %1733 = vmatpush1.bf16.msra.mxu0 0
  %1734 = vmatprep.subr.bf16.mxu0 0
  %1735 = vmatpush1.bf16.msra.mxu0 0
  %1736 = vmatprep.subr.bf16.mxu0 0
  %1737 = vmatpush1.bf16.msra.mxu0 0
  %1738 = vmatprep.subr.bf16.mxu0 0
  %1739 = vmatpush1.bf16.msra.mxu0 0
  %1740 = vmatprep.subr.bf16.mxu0 0
  %1741 = vmatpush1.bf16.msra.mxu0 0
  %1742 = vmatprep.subr.bf16.mxu0 0
  %1743 = vmatpush1.bf16.msra.mxu0 0
  %1744 = vmatprep.subr.bf16.mxu0 0
  %1745 = vmatpush1.bf16.msra.mxu0 0
  %1746 = vmatprep.subr.bf16.mxu0 0
  %1747 = vmatpush1.bf16.msra.mxu0 0
  %1748 = vmatprep.subr.bf16.mxu0 0
  %1749 = vmatpush1.bf16.msra.mxu0 0
  %1750 = vmatprep.subr.bf16.mxu0 0
  %1751 = vmatpush1.bf16.msra.mxu0 0
  %1752 = vmatprep.mubr.bf16.mxu0 0
  %1753 = vmatmul.mubr.bf16.gmra.mrb[0].mxu0 %v1718
  %v1754 = vpop.f32.mrb[0].mxu0
  %v1755 = vadd.f32 0.0, %v1754
  %v1756 = vpop.f32.mrb[0].mxu0
  %v1757 = vpop.f32.mrb[0].mxu0
  %v1758 = vpop.f32.mrb[0].mxu0
  %1759 = vdwg.mxu0
  %v1760 = vadd.f32 %v1712, %v1755
  %v1761 = vxor.u32 %v1760, 2147483648
  %v1762 = vmul.f32 %v1761, 1.442695
  %v1763 = vpow.pop %v1762
  %v1764 = vadd.f32 %v1763, 1.0
  %v1765 = vrcp.pop %v1764
  %v1766 = vmul.f32 1.0, %v1765
  %v1767 = vtanh.pop %v1760
  %v1768 = vmul.f32 %v1766, %v1698
  %1770 = vrot.lane.b32.xlu0 %v1767, 64
  %v1771 = vpop.permute.xlu0 %1770
  %v1773 = vmul.f32 %v1766, %v1771
  %1775 = vrot.lane.b32.xlu0 %v1773, 32
  %v1776 = vpop.permute.xlu0 %1775
  %v1778 = vadd.f32 %v1768, %v1776
  %v1779 = vtanh.pop %v1778
  %1781 = vrot.lane.b32.xlu0 %v1779, 64
  %v1782 = vpop.permute.xlu0 %1781
  %v1784 = vmul.f32 %v1766, %v1782
  %vm1785 = vcmp.eq.s32.totalorder %v1298, 6
  %v1786 = vsel %vm1785, 1, 0
  %1787 = vset.pattern.permute.xlu0 0
  %1788 = vperm.xlu0 %1787, %v1786
  %v1789 = vpop.permute.xlu0 %1788
  %vm1790 = vcmp.eq.s32.totalorder %v1789, 1
  %v1791 = vsel %vm1790, %v1784, %v1711
  %v1792 = vld [vmem:[#allocation2 + $0x30] sm:$0xff]
  %v1793 = vpack.c.bf16 %v1784, %v1784
  %1795 = vrot.lane.b32.xlu0 %v1793, 32
  %v1796 = vpop.permute.xlu0 %1795
  %v1798 = vsel %vm1316, %v1796, 0
  %1800 = vmatprep.subr.bf16.mxu0 0
  %1801 = vmatpush1.bf16.msra.mxu0 %v1312
  %1802 = vmatprep.subr.bf16.mxu0 0
  %1803 = vmatpush1.bf16.msra.mxu0 %v1313
  %1804 = vmatprep.subr.bf16.mxu0 0
  %1805 = vmatpush1.bf16.msra.mxu0 0
  %1806 = vmatprep.subr.bf16.mxu0 0
  %1807 = vmatpush1.bf16.msra.mxu0 0
  %1808 = vmatprep.subr.bf16.mxu0 0
  %1809 = vmatpush1.bf16.msra.mxu0 0
  %1810 = vmatprep.subr.bf16.mxu0 0
  %1811 = vmatpush1.bf16.msra.mxu0 0
  %1812 = vmatprep.subr.bf16.mxu0 0
  %1813 = vmatpush1.bf16.msra.mxu0 0
  %1814 = vmatprep.subr.bf16.mxu0 0
  %1815 = vmatpush1.bf16.msra.mxu0 0
  %1816 = vmatprep.subr.bf16.mxu0 0
  %1817 = vmatpush1.bf16.msra.mxu0 0
  %1818 = vmatprep.subr.bf16.mxu0 0
  %1819 = vmatpush1.bf16.msra.mxu0 0
  %1820 = vmatprep.subr.bf16.mxu0 0
  %1821 = vmatpush1.bf16.msra.mxu0 0
  %1822 = vmatprep.subr.bf16.mxu0 0
  %1823 = vmatpush1.bf16.msra.mxu0 0
  %1824 = vmatprep.subr.bf16.mxu0 0
  %1825 = vmatpush1.bf16.msra.mxu0 0
  %1826 = vmatprep.subr.bf16.mxu0 0
  %1827 = vmatpush1.bf16.msra.mxu0 0
  %1828 = vmatprep.subr.bf16.mxu0 0
  %1829 = vmatpush1.bf16.msra.mxu0 0
  %1830 = vmatprep.subr.bf16.mxu0 0
  %1831 = vmatpush1.bf16.msra.mxu0 0
  %1832 = vmatprep.mubr.bf16.mxu0 0
  %1833 = vmatmul.mubr.bf16.gmra.mrb[0].mxu0 %v1798
  %v1834 = vpop.f32.mrb[0].mxu0
  %v1835 = vadd.f32 0.0, %v1834
  %v1836 = vpop.f32.mrb[0].mxu0
  %v1837 = vpop.f32.mrb[0].mxu0
  %v1838 = vpop.f32.mrb[0].mxu0
  %1839 = vdwg.mxu0
  %v1840 = vadd.f32 %v1792, %v1835
  %v1841 = vxor.u32 %v1840, 2147483648
  %v1842 = vmul.f32 %v1841, 1.442695
  %v1843 = vpow.pop %v1842
  %v1844 = vadd.f32 %v1843, 1.0
  %v1845 = vrcp.pop %v1844
  %v1846 = vmul.f32 1.0, %v1845
  %v1847 = vtanh.pop %v1840
  %v1848 = vmul.f32 %v1846, %v1778
  %1850 = vrot.lane.b32.xlu0 %v1847, 64
  %v1851 = vpop.permute.xlu0 %1850
  %v1853 = vmul.f32 %v1846, %v1851
  %1855 = vrot.lane.b32.xlu0 %v1853, 32
  %v1856 = vpop.permute.xlu0 %1855
  %v1858 = vadd.f32 %v1848, %v1856
  %v1859 = vtanh.pop %v1858
  %1861 = vrot.lane.b32.xlu0 %v1859, 64
  %v1862 = vpop.permute.xlu0 %1861
  %v1864 = vmul.f32 %v1846, %v1862
  %vm1865 = vcmp.eq.s32.totalorder %v1298, 7
  %v1866 = vsel %vm1865, 1, 0
  %1867 = vset.pattern.permute.xlu0 0
  %1868 = vperm.xlu0 %1867, %v1866
  %v1869 = vpop.permute.xlu0 %1868
  %vm1870 = vcmp.eq.s32.totalorder %v1869, 1
  %v1871 = vsel %vm1870, %v1864, %v1791
  %v1872 = vld [vmem:[#allocation2 + $0x38] sm:$0xff]
  %v1873 = vpack.c.bf16 %v1864, %v1864
  %1875 = vrot.lane.b32.xlu0 %v1873, 32
  %v1876 = vpop.permute.xlu0 %1875
  %v1878 = vsel %vm1316, %v1876, 0
  %1880 = vmatprep.subr.bf16.mxu0 0
  %1881 = vmatpush1.bf16.msra.mxu0 %v1312
  %1882 = vmatprep.subr.bf16.mxu0 0
  %1883 = vmatpush1.bf16.msra.mxu0 %v1313
  %1884 = vmatprep.subr.bf16.mxu0 0
  %1885 = vmatpush1.bf16.msra.mxu0 0
  %1886 = vmatprep.subr.bf16.mxu0 0
  %1887 = vmatpush1.bf16.msra.mxu0 0
  %1888 = vmatprep.subr.bf16.mxu0 0
  %1889 = vmatpush1.bf16.msra.mxu0 0
  %1890 = vmatprep.subr.bf16.mxu0 0
  %1891 = vmatpush1.bf16.msra.mxu0 0
  %1892 = vmatprep.subr.bf16.mxu0 0
  %1893 = vmatpush1.bf16.msra.mxu0 0
  %1894 = vmatprep.subr.bf16.mxu0 0
  %1895 = vmatpush1.bf16.msra.mxu0 0
  %1896 = vmatprep.subr.bf16.mxu0 0
  %1897 = vmatpush1.bf16.msra.mxu0 0
  %1898 = vmatprep.subr.bf16.mxu0 0
  %1899 = vmatpush1.bf16.msra.mxu0 0
  %1900 = vmatprep.subr.bf16.mxu0 0
  %1901 = vmatpush1.bf16.msra.mxu0 0
  %1902 = vmatprep.subr.bf16.mxu0 0
  %1903 = vmatpush1.bf16.msra.mxu0 0
  %1904 = vmatprep.subr.bf16.mxu0 0
  %1905 = vmatpush1.bf16.msra.mxu0 0
  %1906 = vmatprep.subr.bf16.mxu0 0
  %1907 = vmatpush1.bf16.msra.mxu0 0
  %1908 = vmatprep.subr.bf16.mxu0 0
  %1909 = vmatpush1.bf16.msra.mxu0 0
  %1910 = vmatprep.subr.bf16.mxu0 0
  %1911 = vmatpush1.bf16.msra.mxu0 0
  %1912 = vmatprep.mubr.bf16.mxu0 0
  %1913 = vmatmul.mubr.bf16.gmra.mrb[0].mxu0 %v1878
  %v1914 = vpop.f32.mrb[0].mxu0
  %v1915 = vadd.f32 0.0, %v1914
  %v1916 = vpop.f32.mrb[0].mxu0
  %v1917 = vpop.f32.mrb[0].mxu0
  %v1918 = vpop.f32.mrb[0].mxu0
  %1919 = vdwg.mxu0
  %v1920 = vadd.f32 %v1872, %v1915
  %v1921 = vxor.u32 %v1920, 2147483648
  %v1922 = vmul.f32 %v1921, 1.442695
  %v1923 = vpow.pop %v1922
  %v1924 = vadd.f32 %v1923, 1.0
  %v1925 = vrcp.pop %v1924
  %v1926 = vmul.f32 1.0, %v1925
  %v1927 = vtanh.pop %v1920
  %v1928 = vmul.f32 %v1926, %v1858
  %1930 = vrot.lane.b32.xlu0 %v1927, 64
  %v1931 = vpop.permute.xlu0 %1930
  %v1933 = vmul.f32 %v1926, %v1931
  %1935 = vrot.lane.b32.xlu0 %v1933, 32
  %v1936 = vpop.permute.xlu0 %1935
  %v1938 = vadd.f32 %v1928, %v1936
  %v1939 = vtanh.pop %v1938
  %1941 = vrot.lane.b32.xlu0 %v1939, 64
  %v1942 = vpop.permute.xlu0 %1941
  %v1944 = vmul.f32 %v1926, %v1942
  %vm1945 = vcmp.eq.s32.totalorder %v1298, 8
  %v1946 = vsel %vm1945, 1, 0
  %1947 = vset.pattern.permute.xlu0 0
  %1948 = vperm.xlu0 %1947, %v1946
  %v1949 = vpop.permute.xlu0 %1948
  %vm1950 = vcmp.eq.s32.totalorder %v1949, 1
  %v1951 = vsel %vm1950, %v1944, %v1871
  %v1952 = vpack.c.bf16 %v1951, %v1951
  %v1953 = vld [vmem:[%s9] sm:$0xf]
  %v1954 = vld [vmem:[%s9 + $0x4] sm:$0xf]
  %v1955 = vld [vmem:[%s9 + $0x8] sm:$0xf]
  %v1956 = vld [vmem:[%s9 + $0xc] sm:$0xf]
  %1958 = vrot.lane.b32.xlu0 %v1952, 32
  %v1959 = vpop.permute.xlu0 %1958
  %v1964 = vunpack.c.l.b16 %v1953
  %v1965 = vunpack.c.l.b16 %v1954
  %v1966 = vunpack.c.l.b16 %v1955
  %v1967 = vunpack.c.l.b16 %v1956
  %v1968 = vpack.c.b16 %v1965, %v1964
  %v1969 = vpack.c.b16 %v1967, %v1966
  %v1973 = vsel %vm1316, %v1959, 0
  %1975 = vmatprep.subr.bf16.mxu0 0
  %1976 = vmatpush1.bf16.msra.mxu0 %v1968
  %1977 = vmatprep.subr.bf16.mxu0 0
  %1978 = vmatpush1.bf16.msra.mxu0 %v1969
  %1979 = vmatprep.subr.bf16.mxu0 0
  %1980 = vmatpush1.bf16.msra.mxu0 0
  %1981 = vmatprep.subr.bf16.mxu0 0
  %1982 = vmatpush1.bf16.msra.mxu0 0
  %1983 = vmatprep.subr.bf16.mxu0 0
  %1984 = vmatpush1.bf16.msra.mxu0 0
  %1985 = vmatprep.subr.bf16.mxu0 0
  %1986 = vmatpush1.bf16.msra.mxu0 0
  %1987 = vmatprep.subr.bf16.mxu0 0
  %1988 = vmatpush1.bf16.msra.mxu0 0
  %1989 = vmatprep.subr.bf16.mxu0 0
  %1990 = vmatpush1.bf16.msra.mxu0 0
  %1991 = vmatprep.subr.bf16.mxu0 0
  %1992 = vmatpush1.bf16.msra.mxu0 0
  %1993 = vmatprep.subr.bf16.mxu0 0
  %1994 = vmatpush1.bf16.msra.mxu0 0
  %1995 = vmatprep.subr.bf16.mxu0 0
  %1996 = vmatpush1.bf16.msra.mxu0 0
  %1997 = vmatprep.subr.bf16.mxu0 0
  %1998 = vmatpush1.bf16.msra.mxu0 0
  %1999 = vmatprep.subr.bf16.mxu0 0
  %2000 = vmatpush1.bf16.msra.mxu0 0
  %2001 = vmatprep.subr.bf16.mxu0 0
  %2002 = vmatpush1.bf16.msra.mxu0 0
  %2003 = vmatprep.subr.bf16.mxu0 0
  %2004 = vmatpush1.bf16.msra.mxu0 0
  %2005 = vmatprep.subr.bf16.mxu0 0
  %2006 = vmatpush1.bf16.msra.mxu0 0
  %2007 = vmatprep.mubr.bf16.mxu0 0
  %2008 = vmatmul.mubr.bf16.gmra.mrb[0].mxu0 %v1973
  %v2009 = vpop.f32.mrb[0].mxu0
  %v2010 = vadd.f32 0.0, %v2009
  %v2011 = vpop.f32.mrb[0].mxu0
  %v2012 = vpop.f32.mrb[0].mxu0
  %v2013 = vpop.f32.mrb[0].mxu0
  %2014 = vdwg.mxu0
  %v2015 = vadd.f32 %v1297, %v2010
  %v2016 = vld [vmem:[%s10] sm:$0x1]
  %v2018 = vlaneseq
  %v2019 = vshrl.u32 %v2018, 7
  %v2020 = vsub.s32 0, %v2019
  %v2021 = vrot.slane %v2016, %v2020
  %v2023 = vadd.f32 %v2015, %v2021
  %v2024 = vmax.f32 %v2023, 0.0
  %v2025 = vpack.c.bf16 %v2024, %v2024
  %v2026 = vld [vmem:[%s11] sm:$0xf]
  %v2027 = vld [vmem:[%s11 + $0x4] sm:$0xf]
  %v2028 = vld [vmem:[%s11 + $0x8] sm:$0xf]
  %v2029 = vld [vmem:[%s11 + $0xc] sm:$0xf]
  %v2030 = vld [vmem:[%s11 + $0x10] sm:$0xf]
  %v2031 = vld [vmem:[%s11 + $0x14] sm:$0xf]
  %v2032 = vld [vmem:[%s11 + $0x18] sm:$0xf]
  %v2033 = vld [vmem:[%s11 + $0x1c] sm:$0xf]
  %v2034 = vld [vmem:[%s11 + $0x20] sm:$0xf]
  %v2035 = vld [vmem:[%s11 + $0x24] sm:$0xf]
  %v2036 = vld [vmem:[%s11 + $0x28] sm:$0xf]
  %v2037 = vld [vmem:[%s11 + $0x2c] sm:$0xf]
  %v2038 = vld [vmem:[%s11 + $0x30] sm:$0xf]
  %v2039 = vld [vmem:[%s11 + $0x34] sm:$0xf]
  %v2040 = vld [vmem:[%s11 + $0x38] sm:$0xf]
  %v2041 = vld [vmem:[%s11 + $0x3c] sm:$0xf]
  %v2042 = vld [vmem:[%s12] sm:$0x1]
  %v2044 = vlaneseq
  %v2045 = vshrl.u32 %v2044, 7
  %v2046 = vsub.s32 0, %v2045
  %v2047 = vrot.slane %v2042, %v2046
  %v2065 = vunpack.c.l.b16 %v2026
  %v2066 = vunpack.c.l.b16 %v2027
  %v2067 = vunpack.c.l.b16 %v2028
  %v2068 = vunpack.c.l.b16 %v2029
  %v2069 = vunpack.c.l.b16 %v2030
  %v2070 = vunpack.c.l.b16 %v2031
  %v2071 = vunpack.c.l.b16 %v2032
  %v2072 = vunpack.c.l.b16 %v2033
  %v2073 = vunpack.c.l.b16 %v2034
  %v2074 = vunpack.c.l.b16 %v2035
  %v2075 = vunpack.c.l.b16 %v2036
  %v2076 = vunpack.c.l.b16 %v2037
  %v2077 = vunpack.c.l.b16 %v2038
  %v2078 = vunpack.c.l.b16 %v2039
  %v2079 = vunpack.c.l.b16 %v2040
  %v2080 = vunpack.c.l.b16 %v2041
  %v2081 = vpack.c.b16 %v2066, %v2065
  %v2082 = vpack.c.b16 %v2068, %v2067
  %v2083 = vpack.c.b16 %v2070, %v2069
  %v2084 = vpack.c.b16 %v2072, %v2071
  %v2085 = vpack.c.b16 %v2074, %v2073
  %v2086 = vpack.c.b16 %v2076, %v2075
  %v2087 = vpack.c.b16 %v2078, %v2077
  %v2088 = vpack.c.b16 %v2080, %v2079
  %2097 = vmatprep.subr.bf16.mxu0 0
  %2098 = vmatpush1.bf16.msra.mxu0 %v2081
  %2099 = vmatprep.subr.bf16.mxu0 0
  %2100 = vmatpush1.bf16.msra.mxu0 %v2082
  %2101 = vmatprep.subr.bf16.mxu0 0
  %2102 = vmatpush1.bf16.msra.mxu0 %v2083
  %2103 = vmatprep.subr.bf16.mxu0 0
  %2104 = vmatpush1.bf16.msra.mxu0 %v2084
  %2105 = vmatprep.subr.bf16.mxu0 0
  %2106 = vmatpush1.bf16.msra.mxu0 %v2085
  %2107 = vmatprep.subr.bf16.mxu0 0
  %2108 = vmatpush1.bf16.msra.mxu0 %v2086
  %2109 = vmatprep.subr.bf16.mxu0 0
  %2110 = vmatpush1.bf16.msra.mxu0 %v2087
  %2111 = vmatprep.subr.bf16.mxu0 0
  %2112 = vmatpush1.bf16.msra.mxu0 %v2088
  %2113 = vmatprep.subr.bf16.mxu0 0
  %2114 = vmatpush1.bf16.msra.mxu0 0
  %2115 = vmatprep.subr.bf16.mxu0 0
  %2116 = vmatpush1.bf16.msra.mxu0 0
  %2117 = vmatprep.subr.bf16.mxu0 0
  %2118 = vmatpush1.bf16.msra.mxu0 0
  %2119 = vmatprep.subr.bf16.mxu0 0
  %2120 = vmatpush1.bf16.msra.mxu0 0
  %2121 = vmatprep.subr.bf16.mxu0 0
  %2122 = vmatpush1.bf16.msra.mxu0 0
  %2123 = vmatprep.subr.bf16.mxu0 0
  %2124 = vmatpush1.bf16.msra.mxu0 0
  %2125 = vmatprep.subr.bf16.mxu0 0
  %2126 = vmatpush1.bf16.msra.mxu0 0
  %2127 = vmatprep.subr.bf16.mxu0 0
  %2128 = vmatpush1.bf16.msra.mxu0 0
  %2129 = vmatprep.mubr.bf16.mxu0 0
  %2130 = vmatmul.mubr.bf16.gmra.mrb[0].mxu0 %v2025
  %v2131 = vpop.f32.mrb[0].mxu0
  %v2132 = vadd.f32 %v2047, %v2131
  %v2133 = vpop.f32.mrb[0].mxu0
  %v2134 = vpop.f32.mrb[0].mxu0
  %v2135 = vpop.f32.mrb[0].mxu0
  %2136 = vdwg.mxu0
  %2137 = vst [vmem:[%s13] sm:$0xff] %v2132
  // Predicated region
  $region54: #{imgques_forward.1} parent=0 // pred_check
    _
  $region55: #{imgques_forward.1} parent=0 // pred_check_branch
    %2139 = sbr.rel (0) target = $region57
  $region56: #{imgques_forward.1} parent=0 // pred_region
    _
  $region57: #{imgques_forward.1} parent=0 // pred_fallthru
    _
  // Predicated region
  $region58: #{imgques_forward.1} parent=0 // pred_check
    _
  $region59: #{imgques_forward.1} parent=0 // pred_check_branch
    %2141 = sbr.rel (0) target = $region61
  $region60: #{imgques_forward.1} parent=0 // pred_region
    _
  $region61: #{imgques_forward.1} parent=0 // pred_fallthru
    _

</llo_original>
